<compile_context>
chip_gen: v6e
topology: v6e:2x2x1
jax: 0.10.0
libtpu: 0.0.40
codegen_flags: <defaults>
</compile_context>

<pallas_src>
import functools

import jax
import jax.numpy as jnp
from jax import lax
from jax.experimental import pallas as pl
from jax.experimental.pallas import tpu as pltpu

EPS = 1e-5  # nn.InstanceNorm2d default


def _condnorm_kernel(x_ref, y_ref, ws_ref, bs_ref, wgb_ref, bgb_ref, u_ref, o_ref,
                     *, tc, hw_true):
    """One (batch sample, C_out tile).

    x_ref  : (1, TC, HWp)      input to be instance-normalized (HWp lane-padded H*W)
    y_ref  : (1, C_in, HyWy)   LOW-RES conditioning input
    ws_ref : (NH, C_in)        conv_share 1x1 weight     bs_ref : (NH, 1)
    wgb_ref: (1, 2*TC, NH)     fused [gamma; beta] 1x1 weights for this C_out tile
    bgb_ref: (1, 2*TC, 1)      fused [gamma; beta] biases for this C_out tile
    u_ref  : (HyWy, HWp)       one-hot nearest-upsample matrix
    o_ref  : (1, TC, HWp)
    """
    # --- instance-norm stats, single pass (var = E[x^2] - mean^2), always f32 ---
    x = x_ref[0].astype(jnp.float32)                          # (TC, HWp)
    inv_hw = 1.0 / hw_true                                    # true H*W, not padded lane extent
    mean = jnp.sum(x, axis=-1, keepdims=True) * inv_hw        # padded lanes are zero -> exact
    msq = jnp.sum(x * x, axis=-1, keepdims=True) * inv_hw
    rstd = lax.rsqrt(msq - mean * mean + EPS)                 # (TC, 1)

    # --- conditioning branch at LOW resolution (1x1 conv commutes with nearest up) ---
    y = y_ref[0]                                              # (C_in, HyWy), native dtype -> MXU
    actv = jnp.dot(ws_ref[...], y, preferred_element_type=jnp.float32)
    actv = jnp.maximum(actv + bs_ref[...].astype(jnp.float32), 0.0)   # (NH, HyWy)

    wgb = wgb_ref[0]                                          # (2*TC, NH) fused gamma|beta
    gb = jnp.dot(wgb, actv.astype(wgb.dtype), preferred_element_type=jnp.float32)
    # Bias before upsample is exact: every (non-padded) column of U has exactly one 1.
    gb = gb + bgb_ref[0].astype(jnp.float32)                  # (2*TC, HyWy)

    # --- nearest upsample of gamma/beta via exact one-hot selection matmul ---
    gb_hr = jnp.dot(gb, u_ref[...], precision=lax.Precision.HIGHEST,
                    preferred_element_type=jnp.float32)       # (2*TC, HWp)
    gamma = gb_hr[:tc]
    beta = gb_hr[tc:]

    # --- folded affine: out = x*(gamma*rstd) + (beta - mean*gamma*rstd) ---
    scale = gamma * rstd
    o_ref[0] = (x * scale + (beta - mean * scale)).astype(o_ref.dtype)   # lane-dense store


def _nearest_indices(out_size, in_size):
    # PyTorch F.interpolate(mode='nearest'): src = floor(dst * in / out)
    return (jnp.arange(out_size) * in_size) // out_size


def _pick_channel_tile(c_out, hw_pad, itemsize, budget_bytes, cap=256):
    """Largest C_out tile (divisor, sublane-aligned or full) whose per-step VMEM fits."""
    def per_step_bytes(t):
        io = 2 * 2 * t * hw_pad * itemsize        # double-buffered x + out blocks
        tmp = 8 * t * hw_pad * 4                  # f32 temporaries (x, x*x, gb_hr, scale, ...)
        return io + tmp

    cands = [d for d in range(c_out, 0, -1)
             if c_out % d == 0 and (d == c_out or d % 8 == 0)]
    for d in cands:
        if d <= cap and per_step_bytes(d) <= budget_bytes:
            return d, per_step_bytes(d)
    t = cands[-1]
    return t, per_step_bytes(t)


def cond_norm(x, y, params, *, kernel_size=1, stride=1):
    """Fused CondNorm forward. x: (N, C_out, H, W), y: (N, C_in, Hy, Wy)."""
    assert kernel_size == 1 and stride == 1, "only pointwise convs are implemented"
    n, c_out, h, w = x.shape
    _, c_in, hy, wy = y.shape
    hw = h * w
    hywy = hy * wy
    hw_pad = ((hw + 127) // 128) * 128            # lane-dense output stores

    nh = params["w_share"].shape[0]
    w_share = params["w_share"].reshape(nh, c_in)
    b_share = params["b_share"].reshape(nh, 1)
    w_gamma = params["w_gamma"].reshape(c_out, nh)
    w_beta = params["w_beta"].reshape(c_out, nh)
    b_gamma = params["b_gamma"].reshape(c_out, 1)
    b_beta = params["b_beta"].reshape(c_out, 1)

    # --- C_out tiling ---
    tc, per_step = _pick_channel_tile(c_out, hw_pad, x.dtype.itemsize,
                                      budget_bytes=32 * 2**20)
    n_t = c_out // tc
    vmem_limit = int(min(48 * 2**20, max(16 * 2**20, 2 * per_step)))

    # --- fused [gamma; beta] weights/biases, pre-arranged per C_out tile ---
    w_gb = jnp.concatenate([w_gamma.reshape(n_t, tc, nh),
                            w_beta.reshape(n_t, tc, nh)], axis=1)     # (n_t, 2*tc, nh)
    b_gb = jnp.concatenate([b_gamma.reshape(n_t, tc, 1),
                            b_beta.reshape(n_t, tc, 1)], axis=1)      # (n_t, 2*tc, 1)

    # --- one-hot nearest-upsample matrix (HyWy, HWp): exact PyTorch 'nearest' mapping ---
    rows = _nearest_indices(h, hy)                                    # (H,)
    cols = _nearest_indices(w, wy)                                    # (W,)
    src_flat = (rows[:, None] * wy + cols[None, :]).reshape(hw)       # (HW,)
    u = (jnp.arange(hywy)[:, None] == src_flat[None, :]).astype(jnp.float32)
    if hw_pad != hw:
        u = jnp.pad(u, ((0, 0), (0, hw_pad - hw)))

    # --- lane-dense views: H*W flattened on lanes (zero-pad to multiple of 128) ---
    x_f = x.reshape(n, c_out, hw)
    if hw_pad != hw:
        x_f = jnp.pad(x_f, ((0, 0), (0, 0), (0, hw_pad - hw)))
    y_f = y.reshape(n, c_in, hywy)                                    # low-res, no y_up in HBM

    kernel = functools.partial(_condnorm_kernel, tc=tc, hw_true=hw)

    out_flat = pl.pallas_call(
        kernel,
        out_shape=jax.ShapeDtypeStruct((n, c_out, hw_pad), x.dtype),
        grid_spec=pltpu.PrefetchScalarGridSpec(
            num_scalar_prefetch=0,
            grid=(n, n_t),
            in_specs=[
                pl.BlockSpec((1, tc, hw_pad), lambda b, c: (b, c, 0)),    # x
                pl.BlockSpec((1, c_in, hywy), lambda b, c: (b, 0, 0)),    # y (low-res)
                pl.BlockSpec((nh, c_in), lambda b, c: (0, 0)),            # w_share
                pl.BlockSpec((nh, 1), lambda b, c: (0, 0)),               # b_share
                pl.BlockSpec((1, 2 * tc, nh), lambda b, c: (c, 0, 0)),    # w_gamma|beta (tiled)
                pl.BlockSpec((1, 2 * tc, 1), lambda b, c: (c, 0, 0)),     # b_gamma|beta (tiled)
                pl.BlockSpec((hywy, hw_pad), lambda b, c: (0, 0)),        # upsample matrix
            ],
            out_specs=pl.BlockSpec((1, tc, hw_pad), lambda b, c: (b, c, 0)),
        ),
        compiler_params=pltpu.CompilerParams(
            dimension_semantics=("parallel", "parallel"),
            vmem_limit_bytes=vmem_limit,
        ),
    )(x_f, y_f, w_share, b_share, w_gb, b_gb, u)

    if hw_pad != hw:
        out_flat = out_flat[:, :, :hw]
    return out_flat.reshape(n, c_out, h, w)


def _reference(x, y, p, eps=EPS):
    """Pure-JAX transcription of the PyTorch forward (kernel_size=1)."""
    n, c_out, h, w = x.shape
    hy, wy = y.shape[2:]
    mean = x.mean(axis=(2, 3), keepdims=True)
    var = x.var(axis=(2, 3), keepdims=True)                # biased, as in InstanceNorm2d
    normed = (x - mean) / jnp.sqrt(var + eps)

    rows = _nearest_indices(h, hy)
    cols = _nearest_indices(w, wy)
    y_up = y[:, :, rows[:, None], cols[None, :]]

    def conv1x1(inp, wgt, b):
        return jnp.einsum("oi,nihw->nohw", wgt[:, :, 0, 0], inp) + b[None, :, None, None]

    actv = jax.nn.relu(conv1x1(y_up, p["w_share"], p["b_share"]))
    gamma = conv1x1(actv, p["w_gamma"], p["b_gamma"])
    beta = conv1x1(actv, p["w_beta"], p["b_beta"])
    return normed * gamma + beta


if __name__ == "__main__":
    key = jax.random.PRNGKey(0)
    ks = jax.random.split(key, 8)

    N, IN_PLANES, OUT_PLANES, NHIDDEN = 2, 8, 16, 32
    H, W = 16, 16          # H*W = 256 -> lane-dense
    HY, WY = 8, 8          # y is nearest-upsampled 2x to match x

    x = jax.random.normal(ks[0], (N, OUT_PLANES, H, W), dtype=jnp.float32)
    y = jax.random.normal(ks[1], (N, IN_PLANES, HY, WY), dtype=jnp.float32)
    params = {
        "w_share": jax.random.normal(ks[2], (NHIDDEN, IN_PLANES, 1, 1), jnp.float32) * (IN_PLANES ** -0.5),
        "b_share": jax.random.normal(ks[3], (NHIDDEN,), jnp.float32) * 0.1,
        "w_gamma": jax.random.normal(ks[4], (OUT_PLANES, NHIDDEN, 1, 1), jnp.float32) * (NHIDDEN ** -0.5),
        "b_gamma": jax.random.normal(ks[5], (OUT_PLANES,), jnp.float32) * 0.1,
        "w_beta": jax.random.normal(ks[6], (OUT_PLANES, NHIDDEN, 1, 1), jnp.float32) * (NHIDDEN ** -0.5),
        "b_beta": jax.random.normal(ks[7], (OUT_PLANES,), jnp.float32) * 0.1,
    }

    out = cond_norm(x, y, params, kernel_size=1, stride=1)
    out = jax.block_until_ready(out)

    ref = _reference(x, y, params)
    assert out.shape == (N, OUT_PLANES, H, W), out.shape
    max_err = float(jnp.max(jnp.abs(out - ref)))
    assert jnp.allclose(out, ref, atol=5e-3, rtol=5e-3), f"mismatch vs reference, max_err={max_err}"
    print("KERNEL_OK")
</pallas_src>

<mosaic_0001>
module attributes {stable_mosaic.version = 11 : i64} {
  func.func @_condnorm_kernel(%arg0: i32, %arg1: i32, %arg2: memref<1x16x256xf32, #tpu.memory_space<vmem>>, %arg3: memref<1x8x64xf32, #tpu.memory_space<vmem>>, %arg4: memref<32x8xf32, #tpu.memory_space<vmem>>, %arg5: memref<32x1xf32, #tpu.memory_space<vmem>>, %arg6: memref<1x32x32xf32, #tpu.memory_space<vmem>>, %arg7: memref<1x32x1xf32, #tpu.memory_space<vmem>>, %arg8: memref<64x256xf32, #tpu.memory_space<vmem>>, %arg9: memref<1x16x256xf32, #tpu.memory_space<vmem>>) attributes {dimension_semantics = [#tpu.dimension_semantics<parallel>, #tpu.dimension_semantics<parallel>], iteration_bounds = array<i64: 2, 1>, scalar_prefetch = 0 : i64, scratch_operands = 0 : i64, tpu.core_type = #tpu.core_type<tc>, window_params = [{transform_indices = @transform_0, window_bounds = array<i64: 1, 16, 256>}, {transform_indices = @transform_1, window_bounds = array<i64: 1, 8, 64>}, {pipeline_mode = #tpu.pipeline_mode<synchronous>, transform_indices = @transform_2, window_bounds = array<i64: 32, 8>}, {pipeline_mode = #tpu.pipeline_mode<synchronous>, transform_indices = @transform_3, window_bounds = array<i64: 32, 1>}, {transform_indices = @transform_4, window_bounds = array<i64: 1, 32, 32>}, {transform_indices = @transform_5, window_bounds = array<i64: 1, 32, 1>}, {pipeline_mode = #tpu.pipeline_mode<synchronous>, transform_indices = @transform_6, window_bounds = array<i64: 64, 256>}, {transform_indices = @transform_7, window_bounds = array<i64: 1, 16, 256>}]} {
    %c0 = arith.constant 0 : index
    %c0_0 = arith.constant 0 : index
    %c0_1 = arith.constant 0 : index
    %0 = vector.load %arg2[%c0, %c0_0, %c0_1] : memref<1x16x256xf32, #tpu.memory_space<vmem>>, vector<1x16x256xf32>
    %1 = vector.shape_cast %0 : vector<1x16x256xf32> to vector<16x256xf32>
    %cst = arith.constant dense<0.000000e+00> : vector<16xf32>
    %2 = vector.multi_reduction <add>, %1, %cst [1] : vector<16x256xf32> to vector<16xf32>
    %3 = vector.shape_cast %2 : vector<16xf32> to vector<16x1xf32>
    %cst_2 = arith.constant 3.906250e-03 : f32
    %4 = vector.broadcast %cst_2 : f32 to vector<16x1xf32>
    %5 = arith.mulf %3, %4 : vector<16x1xf32>
    %6 = arith.mulf %1, %1 : vector<16x256xf32>
    %cst_3 = arith.constant dense<0.000000e+00> : vector<16xf32>
    %7 = vector.multi_reduction <add>, %6, %cst_3 [1] : vector<16x256xf32> to vector<16xf32>
    %8 = vector.shape_cast %7 : vector<16xf32> to vector<16x1xf32>
    %cst_4 = arith.constant 3.906250e-03 : f32
    %9 = vector.broadcast %cst_4 : f32 to vector<16x1xf32>
    %10 = arith.mulf %8, %9 : vector<16x1xf32>
    %11 = arith.mulf %5, %5 : vector<16x1xf32>
    %12 = arith.subf %10, %11 : vector<16x1xf32>
    %cst_5 = arith.constant 9.99999974E-6 : f32
    %13 = vector.broadcast %cst_5 : f32 to vector<16x1xf32>
    %14 = arith.addf %12, %13 : vector<16x1xf32>
    %15 = math.rsqrt %14 : vector<16x1xf32>
    %c0_6 = arith.constant 0 : index
    %c0_7 = arith.constant 0 : index
    %c0_8 = arith.constant 0 : index
    %16 = vector.load %arg3[%c0_6, %c0_7, %c0_8] : memref<1x8x64xf32, #tpu.memory_space<vmem>>, vector<1x8x64xf32>
    %17 = vector.shape_cast %16 : vector<1x8x64xf32> to vector<8x64xf32>
    %c0_9 = arith.constant 0 : index
    %c0_10 = arith.constant 0 : index
    %18 = vector.load %arg4[%c0_9, %c0_10] : memref<32x8xf32, #tpu.memory_space<vmem>>, vector<32x8xf32>
    %cst_11 = arith.constant dense<0.000000e+00> : vector<32x64xf32>
    %19 = tpu.matmul %18, %17, %cst_11 {dimension_numbers = #tpu.dot_dimension_numbers<[1], [0], [0], [1], [0, 0, 1, 1], [], []>} : vector<32x8xf32>, vector<8x64xf32>, vector<32x64xf32> -> vector<32x64xf32>
    %c0_12 = arith.constant 0 : index
    %c0_13 = arith.constant 0 : index
    %20 = vector.load %arg5[%c0_12, %c0_13] : memref<32x1xf32, #tpu.memory_space<vmem>>, vector<32x1xf32>
    %21 = vector.broadcast %20 : vector<32x1xf32> to vector<32x64xf32>
    %22 = arith.addf %19, %21 : vector<32x64xf32>
    %cst_14 = arith.constant 0.000000e+00 : f32
    %23 = vector.broadcast %cst_14 : f32 to vector<32x64xf32>
    %24 = arith.maximumf %22, %23 : vector<32x64xf32>
    %c0_15 = arith.constant 0 : index
    %c0_16 = arith.constant 0 : index
    %c0_17 = arith.constant 0 : index
    %25 = vector.load %arg6[%c0_15, %c0_16, %c0_17] : memref<1x32x32xf32, #tpu.memory_space<vmem>>, vector<1x32x32xf32>
    %26 = vector.shape_cast %25 : vector<1x32x32xf32> to vector<32x32xf32>
    %cst_18 = arith.constant dense<0.000000e+00> : vector<32x64xf32>
    %27 = tpu.matmul %26, %24, %cst_18 {dimension_numbers = #tpu.dot_dimension_numbers<[1], [0], [0], [1], [0, 0, 1, 1], [], []>} : vector<32x32xf32>, vector<32x64xf32>, vector<32x64xf32> -> vector<32x64xf32>
    %c0_19 = arith.constant 0 : index
    %c0_20 = arith.constant 0 : index
    %c0_21 = arith.constant 0 : index
    %28 = vector.load %arg7[%c0_19, %c0_20, %c0_21] : memref<1x32x1xf32, #tpu.memory_space<vmem>>, vector<1x32x1xf32>
    %29 = vector.shape_cast %28 : vector<1x32x1xf32> to vector<32x1xf32>
    %30 = vector.broadcast %29 : vector<32x1xf32> to vector<32x64xf32>
    %31 = arith.addf %27, %30 : vector<32x64xf32>
    %c0_22 = arith.constant 0 : index
    %c0_23 = arith.constant 0 : index
    %32 = vector.load %arg8[%c0_22, %c0_23] : memref<64x256xf32, #tpu.memory_space<vmem>>, vector<64x256xf32>
    %cst_24 = arith.constant dense<0.000000e+00> : vector<32x256xf32>
    %33 = tpu.matmul %31, %32, %cst_24 {dimension_numbers = #tpu.dot_dimension_numbers<[1], [0], [0], [1], [0, 0, 1, 1], [], []>, precision = #tpu.contract_precision<fp32>} : vector<32x64xf32>, vector<64x256xf32>, vector<32x256xf32> -> vector<32x256xf32>
    %34 = vector.extract_strided_slice %33 {offsets = [0, 0], sizes = [16, 256], strides = [1, 1]} : vector<32x256xf32> to vector<16x256xf32>
    %35 = vector.extract_strided_slice %33 {offsets = [16, 0], sizes = [16, 256], strides = [1, 1]} : vector<32x256xf32> to vector<16x256xf32>
    %36 = vector.broadcast %15 : vector<16x1xf32> to vector<16x256xf32>
    %37 = arith.mulf %34, %36 : vector<16x256xf32>
    %38 = arith.mulf %1, %37 : vector<16x256xf32>
    %39 = vector.broadcast %5 : vector<16x1xf32> to vector<16x256xf32>
    %40 = arith.mulf %39, %37 : vector<16x256xf32>
    %41 = arith.subf %35, %40 : vector<16x256xf32>
    %42 = arith.addf %38, %41 : vector<16x256xf32>
    %c0_25 = arith.constant 0 : index
    %c0_26 = arith.constant 0 : index
    %c0_27 = arith.constant 0 : index
    %43 = vector.load %arg9[%c0_25, %c0_26, %c0_27] : memref<1x16x256xf32, #tpu.memory_space<vmem>>, vector<1x16x256xf32>
    %44 = vector.shape_cast %43 : vector<1x16x256xf32> to vector<16x256xf32>
    %45 = vector.shape_cast %42 : vector<16x256xf32> to vector<1x16x256xf32>
    tpu.vector_store %arg9[%c0_25, %c0_26, %c0_27], %45 {strides = array<i32>} : memref<1x16x256xf32, #tpu.memory_space<vmem>>, vector<1x16x256xf32>,
    return
  }
  func.func @transform_0(%arg0: i32, %arg1: i32) -> (i32, i32, i32) {
    %c0_i32 = arith.constant 0 : i32
    %c0_i32_0 = arith.constant 0 : i32
    return %arg0, %arg1, %c0_i32 : i32, i32, i32
  }
  func.func @transform_1(%arg0: i32, %arg1: i32) -> (i32, i32, i32) {
    %c0_i32 = arith.constant 0 : i32
    %c0_i32_0 = arith.constant 0 : i32
    %c0_i32_1 = arith.constant 0 : i32
    return %arg0, %c0_i32, %c0_i32_0 : i32, i32, i32
  }
  func.func @transform_2(%arg0: i32, %arg1: i32) -> (i32, i32) {
    %c0_i32 = arith.constant 0 : i32
    %c0_i32_0 = arith.constant 0 : i32
    %c0_i32_1 = arith.constant 0 : i32
    return %c0_i32, %c0_i32_0 : i32, i32
  }
  func.func @transform_3(%arg0: i32, %arg1: i32) -> (i32, i32) {
    %c0_i32 = arith.constant 0 : i32
    %c0_i32_0 = arith.constant 0 : i32
    %c0_i32_1 = arith.constant 0 : i32
    return %c0_i32, %c0_i32_0 : i32, i32
  }
  func.func @transform_4(%arg0: i32, %arg1: i32) -> (i32, i32, i32) {
    %c0_i32 = arith.constant 0 : i32
    %c0_i32_0 = arith.constant 0 : i32
    %c0_i32_1 = arith.constant 0 : i32
    return %arg1, %c0_i32, %c0_i32_0 : i32, i32, i32
  }
  func.func @transform_5(%arg0: i32, %arg1: i32) -> (i32, i32, i32) {
    %c0_i32 = arith.constant 0 : i32
    %c0_i32_0 = arith.constant 0 : i32
    %c0_i32_1 = arith.constant 0 : i32
    return %arg1, %c0_i32, %c0_i32_0 : i32, i32, i32
  }
  func.func @transform_6(%arg0: i32, %arg1: i32) -> (i32, i32) {
    %c0_i32 = arith.constant 0 : i32
    %c0_i32_0 = arith.constant 0 : i32
    %c0_i32_1 = arith.constant 0 : i32
    return %c0_i32, %c0_i32_0 : i32, i32
  }
  func.func @transform_7(%arg0: i32, %arg1: i32) -> (i32, i32, i32) {
    %c0_i32 = arith.constant 0 : i32
    %c0_i32_0 = arith.constant 0 : i32
    return %arg0, %arg1, %c0_i32 : i32, i32, i32
  }
}

</mosaic_0001>

<llo_original>
// kernel: tpu_custom_call.1
$region0: #{tpu_custom_call.1}
  #allocation0 [shape = 'u32[]', space=smem, size = 0x4, offset = 0x4, fixed_abs, tag = 'smem constant byte address 0x4 - core index']
  #allocation1 [shape = 'u32[144,128]{1,0:T(1,128)}', space=vmem, size = 0x12000, scoped, tag = 'internal scratch']
  %s0 = inlined_call_operand.vmem [shape: f32[2,16,256], index: 0, kind: input, shape index: {}]
  %s1 = inlined_call_operand.hbm [shape: f32[2,8,64], index: 1, kind: input, shape index: {}]
  %s2 = inlined_call_operand.vmem [shape: f32[32,8], index: 2, kind: input, shape index: {}]
  %s3 = inlined_call_operand.vmem [shape: f32[32,1], index: 3, kind: input, shape index: {}]
  %s4 = inlined_call_operand.vmem [shape: f32[1,32,32], index: 4, kind: input, shape index: {}]
  %s5 = inlined_call_operand.vmem [shape: f32[1,32,1], index: 5, kind: input, shape index: {}]
  %s6 = inlined_call_operand.hbm [shape: f32[64,256], index: 6, kind: input, shape index: {}]
  %s7 = inlined_call_operand.hbm [shape: f32[2,16,256], index: 7, kind: output, shape index: {}]
  %s8 = sld [smem:[#allocation0]]
  $region69: #{tpu_custom_call.1} parent=0
    _
  %s10 = ssub.s32 1, %s8
  %s11 = scalar_select 0, %s10, %s8
  $region1: #{tpu_custom_call.1} parent=0
    #allocation2 [shape = 'u8[8192]{0}', space=vmem, size = 0x2000, scoped, tag = 'input window, operand 1']
    #allocation3 [shape = 's32[2]{0}', space=sflag, size = 0x8, scoped, tag = 'scoped memory for tpu_custom_call.1']
    #allocation4 [shape = 's32[2]{0}', space=sflag, size = 0x8, scoped, tag = 'scoped memory for tpu_custom_call.1']
    #allocation5 [shape = 'u8[65536]{0}', space=vmem, size = 0x10000, scoped, tag = 'input window, operand 6, single buffered']
    #allocation6 [shape = 's32[1]{0}', space=sflag, size = 0x4, scoped, tag = 'scoped memory for tpu_custom_call.1']
    #allocation7 [shape = 'u8[32768]{0}', space=vmem, size = 0x8000, scoped, tag = 'output window, operand 0']
    %12 = vsyncpa [#allocation3], 0
    %s13 = scalar_lea.sflag [#allocation3], 1
    %14 = vsyncpa %s13, 0
    %15 = vsyncpa [#allocation6], 0
    %16 = vsyncpa [#allocation4], 0
    %s17 = scalar_lea.sflag [#allocation4], 1
    %18 = vsyncpa %s17, 0
    loop: start=0, step=1, limit=4
    $region2: #{tpu_custom_call.1} parent=1 // loop_pre_header
      _
    $region3: #{tpu_custom_call.1} parent=1 // loop_header
      %s20 = sphi 0, %s24
      %p21 = scmp.ge.s32.totalorder %s20, 4
      %s27 = sphi 0, %s39
      %s28 = sphi 0, %s35
      %s29 = sphi 0, %s27
      %s30 = sphi 0, %s28
      %s31 = sphi 0, %s29
      %s32 = sphi 0, %s30
      %s44 = sphi 0, %s46
      %s47 = sphi 0, %s44
      %s48 = sphi 0, %s47
      %s64 = sphi 0, %s48
      %s70 = sphi 0, %s72
      %s73 = sphi 0, %s70
      %s74 = sphi 0, %s73
      %s90 = sphi 0, %s74
      %s94 = sphi 0, %s94
      %s96 = sphi 0, %s94
      %s97 = sphi 0, %s96
      %s111 = sphi 0, %s97
      %s115 = sphi 0, %s115
      %s117 = sphi 0, %s115
      %s118 = sphi 0, %s117
      %s132 = sphi 0, %s118
      %s138 = sphi 0, %s140
      %s141 = sphi 0, %s138
      %s142 = sphi 0, %s141
      %s158 = sphi 0, %s142
      %s164 = sphi 0, %s166
      %s167 = sphi 0, %s164
      %s168 = sphi 0, %s167
      %s184 = sphi 0, %s168
      %s188 = sphi 0, %s188
      %s190 = sphi 0, %s188
      %s191 = sphi 0, %s190
      %s205 = sphi 0, %s191
      %s213 = sphi 0, %s215
      %s216 = sphi 0, %s213
      %s217 = sphi 0, %s216
      %s233 = sphi 0, %s217
    $region4: #{tpu_custom_call.1} parent=1 // loop_header_branch
      %23 = sbr.rel (%p21) target = $region8
    $region5: #{tpu_custom_call.1} parent=1 // loop_body
      %s25 = ssub.s32 %s20, 1
      %s26 = ssub.s32 %s20, 2
      %s33 = sadd.s32 1, %s28
      %p34 = scmp.ge.s32.totalorder %s33, 1
      %s35 = scalar_select %p34, 0, %s33
      %s36 = sadd.s32 1, %s27
      %s37 = scalar_select %p34, %s36, %s27
      %p38 = scmp.ge.s32.totalorder %s37, 2
      %s39 = scalar_select %p38, 0, %s37
      %s40 = ssub.s32 %s27, %s39
      %s41 = ssub.s32 %s28, %s35
      %s42 = sor.u32 %s40, %s41
      %p43 = scmp.eq.s32.totalorder %s42, 0
      %s45 = sadd.s32 %s44, 1
      %s46 = scalar_select %p43, %s44, %s45
      %p49 = pneg %p43
      %p50 = scmp.eq.s32.totalorder %s20, 1
      %p51 = por %p49, %p50
      %p52 = scmp.ne.s32.totalorder %s44, %s47
      %p53 = scmp.eq.s32.totalorder %s20, 0
      %p54 = por %p52, %p53
      %p55 = scmp.ne.s32.totalorder %s44, %s47
      %p56 = scmp.eq.s32.totalorder %s25, 1
      %p57 = por %p55, %p56
      %p58 = scmp.ne.s32.totalorder %s47, %s48
      %p59 = scmp.eq.s32.totalorder %s25, 0
      %p60 = por %p58, %p59
      %p61 = scmp.ne.s32.totalorder %s47, %s48
      %p62 = scmp.eq.s32.totalorder %s26, 1
      %p63 = por %p61, %p62
      %p65 = scmp.ne.s32.totalorder %s48, %s64
      %p66 = scmp.eq.s32.totalorder %s26, 0
      %p67 = por %p65, %p66
      %s68 = ssub.s32 %s27, %s39
      %p69 = scmp.eq.s32.totalorder %s68, 0
      %s71 = sadd.s32 %s70, 1
      %s72 = scalar_select %p69, %s70, %s71
      %p75 = pneg %p69
      %p76 = scmp.eq.s32.totalorder %s20, 1
      %p77 = por %p75, %p76
      %p78 = scmp.ne.s32.totalorder %s70, %s73
      %p79 = scmp.eq.s32.totalorder %s20, 0
      %p80 = por %p78, %p79
      %p81 = scmp.ne.s32.totalorder %s70, %s73
      %p82 = scmp.eq.s32.totalorder %s25, 1
      %p83 = por %p81, %p82
      %p84 = scmp.ne.s32.totalorder %s73, %s74
      %p85 = scmp.eq.s32.totalorder %s25, 0
      %p86 = por %p84, %p85
      %p87 = scmp.ne.s32.totalorder %s73, %s74
      %p88 = scmp.eq.s32.totalorder %s26, 1
      %p89 = por %p87, %p88
      %p91 = scmp.ne.s32.totalorder %s74, %s90
      %p92 = scmp.eq.s32.totalorder %s26, 0
      %p93 = por %p91, %p92
      %s95 = sadd.s32 %s94, 1
      %p98 = scmp.eq.s32.totalorder %s20, 1
      %p99 = scmp.ne.s32.totalorder %s94, %s96
      %p100 = scmp.eq.s32.totalorder %s20, 0
      %p101 = por %p99, %p100
      %p102 = scmp.ne.s32.totalorder %s94, %s96
      %p103 = scmp.eq.s32.totalorder %s25, 1
      %p104 = por %p102, %p103
      %p105 = scmp.ne.s32.totalorder %s96, %s97
      %p106 = scmp.eq.s32.totalorder %s25, 0
      %p107 = por %p105, %p106
      %p108 = scmp.ne.s32.totalorder %s96, %s97
      %p109 = scmp.eq.s32.totalorder %s26, 1
      %p110 = por %p108, %p109
      %p112 = scmp.ne.s32.totalorder %s97, %s111
      %p113 = scmp.eq.s32.totalorder %s26, 0
      %p114 = por %p112, %p113
      %s116 = sadd.s32 %s115, 1
      %p119 = scmp.eq.s32.totalorder %s20, 1
      %p120 = scmp.ne.s32.totalorder %s115, %s117
      %p121 = scmp.eq.s32.totalorder %s20, 0
      %p122 = por %p120, %p121
      %p123 = scmp.ne.s32.totalorder %s115, %s117
      %p124 = scmp.eq.s32.totalorder %s25, 1
      %p125 = por %p123, %p124
      %p126 = scmp.ne.s32.totalorder %s117, %s118
      %p127 = scmp.eq.s32.totalorder %s25, 0
      %p128 = por %p126, %p127
      %p129 = scmp.ne.s32.totalorder %s117, %s118
      %p130 = scmp.eq.s32.totalorder %s26, 1
      %p131 = por %p129, %p130
      %p133 = scmp.ne.s32.totalorder %s118, %s132
      %p134 = scmp.eq.s32.totalorder %s26, 0
      %p135 = por %p133, %p134
      %s136 = ssub.s32 %s28, %s35
      %p137 = scmp.eq.s32.totalorder %s136, 0
      %s139 = sadd.s32 %s138, 1
      %s140 = scalar_select %p137, %s138, %s139
      %p143 = pneg %p137
      %p144 = scmp.eq.s32.totalorder %s20, 1
      %p145 = por %p143, %p144
      %p146 = scmp.ne.s32.totalorder %s138, %s141
      %p147 = scmp.eq.s32.totalorder %s20, 0
      %p148 = por %p146, %p147
      %p149 = scmp.ne.s32.totalorder %s138, %s141
      %p150 = scmp.eq.s32.totalorder %s25, 1
      %p151 = por %p149, %p150
      %p152 = scmp.ne.s32.totalorder %s141, %s142
      %p153 = scmp.eq.s32.totalorder %s25, 0
      %p154 = por %p152, %p153
      %p155 = scmp.ne.s32.totalorder %s141, %s142
      %p156 = scmp.eq.s32.totalorder %s26, 1
      %p157 = por %p155, %p156
      %p159 = scmp.ne.s32.totalorder %s142, %s158
      %p160 = scmp.eq.s32.totalorder %s26, 0
      %p161 = por %p159, %p160
      %s162 = ssub.s32 %s28, %s35
      %p163 = scmp.eq.s32.totalorder %s162, 0
      %s165 = sadd.s32 %s164, 1
      %s166 = scalar_select %p163, %s164, %s165
      %p169 = pneg %p163
      %p170 = scmp.eq.s32.totalorder %s20, 1
      %p171 = por %p169, %p170
      %p172 = scmp.ne.s32.totalorder %s164, %s167
      %p173 = scmp.eq.s32.totalorder %s20, 0
      %p174 = por %p172, %p173
      %p175 = scmp.ne.s32.totalorder %s164, %s167
      %p176 = scmp.eq.s32.totalorder %s25, 1
      %p177 = por %p175, %p176
      %p178 = scmp.ne.s32.totalorder %s167, %s168
      %p179 = scmp.eq.s32.totalorder %s25, 0
      %p180 = por %p178, %p179
      %p181 = scmp.ne.s32.totalorder %s167, %s168
      %p182 = scmp.eq.s32.totalorder %s26, 1
      %p183 = por %p181, %p182
      %p185 = scmp.ne.s32.totalorder %s168, %s184
      %p186 = scmp.eq.s32.totalorder %s26, 0
      %p187 = por %p185, %p186
      %s189 = sadd.s32 %s188, 1
      %p192 = scmp.eq.s32.totalorder %s20, 1
      %p193 = scmp.ne.s32.totalorder %s188, %s190
      %p194 = scmp.eq.s32.totalorder %s20, 0
      %p195 = por %p193, %p194
      %p196 = scmp.ne.s32.totalorder %s188, %s190
      %p197 = scmp.eq.s32.totalorder %s25, 1
      %p198 = por %p196, %p197
      %p199 = scmp.ne.s32.totalorder %s190, %s191
      %p200 = scmp.eq.s32.totalorder %s25, 0
      %p201 = por %p199, %p200
      %p202 = scmp.ne.s32.totalorder %s190, %s191
      %p203 = scmp.eq.s32.totalorder %s26, 1
      %p204 = por %p202, %p203
      %p206 = scmp.ne.s32.totalorder %s191, %s205
      %p207 = scmp.eq.s32.totalorder %s26, 0
      %p208 = por %p206, %p207
      %s209 = ssub.s32 %s27, %s39
      %s210 = ssub.s32 %s28, %s35
      %s211 = sor.u32 %s209, %s210
      %p212 = scmp.eq.s32.totalorder %s211, 0
      %s214 = sadd.s32 %s213, 1
      %s215 = scalar_select %p212, %s213, %s214
      %p218 = pneg %p212
      %p219 = scmp.eq.s32.totalorder %s20, 1
      %p220 = por %p218, %p219
      %p221 = scmp.ne.s32.totalorder %s213, %s216
      %p222 = scmp.eq.s32.totalorder %s20, 0
      %p223 = por %p221, %p222
      %p224 = scmp.ne.s32.totalorder %s213, %s216
      %p225 = scmp.eq.s32.totalorder %s25, 1
      %p226 = por %p224, %p225
      %p227 = scmp.ne.s32.totalorder %s216, %s217
      %p228 = scmp.eq.s32.totalorder %s25, 0
      %p229 = por %p227, %p228
      %p230 = scmp.ne.s32.totalorder %s216, %s217
      %p231 = scmp.eq.s32.totalorder %s26, 1
      %p232 = por %p230, %p231
      %p234 = scmp.ne.s32.totalorder %s217, %s233
      %p235 = scmp.eq.s32.totalorder %s26, 0
      %p236 = por %p234, %p235
      %p237 = scmp.le.s32.totalorder 1, %s20
      %p238 = scmp.lt.s32.totalorder %s20, 3
      %p239 = pnand %p237, %p238
      %p240 = pneg %p239
      // Predicated region
      $region9: #{tpu_custom_call.1} parent=5 // pred_check
        _
      $region10: #{tpu_custom_call.1} parent=5 // pred_check_branch
        %242 = sbr.rel (%p239) target = $region12
      $region11: #{tpu_custom_call.1} parent=5 // pred_region
        %s243 = ssub.s32 %s20, 1
        // Predicated region
        $region13: #{tpu_custom_call.1} parent=11 // pred_check
          %p244 = pneg %p107
        $region14: #{tpu_custom_call.1} parent=11 // pred_check_branch
          %246 = sbr.rel (%p244) target = $region16
        $region15: #{tpu_custom_call.1} parent=11 // pred_region
          _
        $region16: #{tpu_custom_call.1} parent=11 // pred_fallthru
          _
        // Predicated region
        $region17: #{tpu_custom_call.1} parent=11 // pred_check
          %p247 = pneg %p128
        $region18: #{tpu_custom_call.1} parent=11 // pred_check_branch
          %249 = sbr.rel (%p247) target = $region20
        $region19: #{tpu_custom_call.1} parent=11 // pred_region
          _
        $region20: #{tpu_custom_call.1} parent=11 // pred_fallthru
          _
        // Predicated region
        $region21: #{tpu_custom_call.1} parent=11 // pred_check
          %p250 = pneg %p154
        $region22: #{tpu_custom_call.1} parent=11 // pred_check_branch
          %252 = sbr.rel (%p250) target = $region24
        $region23: #{tpu_custom_call.1} parent=11 // pred_region
          %p253 = scmp.lt.s32.totalorder %s30, 0
          %s254 = scalar_select %p253, %s30, 0
          %s255 = smul.addr %s254, 4
          %s256 = smul.addr %s255, 8
          %s257 = scalar_lea.vmem %s4, %s256
        $region24: #{tpu_custom_call.1} parent=11 // pred_fallthru
          _
        // Predicated region
        $region25: #{tpu_custom_call.1} parent=11 // pred_check
          %p258 = pneg %p180
        $region26: #{tpu_custom_call.1} parent=11 // pred_check_branch
          %260 = sbr.rel (%p258) target = $region28
        $region27: #{tpu_custom_call.1} parent=11 // pred_region
          %p261 = scmp.lt.s32.totalorder %s30, 0
          %s262 = scalar_select %p261, %s30, 0
          %s263 = smul.addr %s262, 4
          %s264 = smul.addr %s263, 8
          %s265 = scalar_lea.vmem %s5, %s264
        $region28: #{tpu_custom_call.1} parent=11 // pred_fallthru
          _
        // Predicated region
        $region29: #{tpu_custom_call.1} parent=11 // pred_check
          %p266 = pneg %p201
        $region30: #{tpu_custom_call.1} parent=11 // pred_check_branch
          %268 = sbr.rel (%p266) target = $region32
        $region31: #{tpu_custom_call.1} parent=11 // pred_region
          %s270 = ssub.s32 2048, 2048
          %271 = vsyncadd [#allocation6], %s270
          %s272 = sshll.u32 [#allocation5], 4
          %s273 = int_to_ptr.vmem [resolvable:$true] %s272
          %278 = dma.hbm_to_vmem [thread:$0]  %s6, 2048, %s273, [#allocation6], 256, 256, 16
        $region32: #{tpu_custom_call.1} parent=11 // pred_fallthru
          _
      $region12: #{tpu_custom_call.1} parent=5 // pred_fallthru
        _
      %p279 = scmp.lt.s32.totalorder %s20, 2
      // Predicated region
      $region33: #{tpu_custom_call.1} parent=5 // pred_check
        %p280 = pneg %p279
      $region34: #{tpu_custom_call.1} parent=5 // pred_check_branch
        %282 = sbr.rel (%p280) target = $region36
      $region35: #{tpu_custom_call.1} parent=5 // pred_region
        // Predicated region
        $region37: #{tpu_custom_call.1} parent=35 // pred_check
          %p283 = pneg %p54
        $region38: #{tpu_custom_call.1} parent=35 // pred_check_branch
          %285 = sbr.rel (%p283) target = $region40
        $region39: #{tpu_custom_call.1} parent=35 // pred_region
          %s286 = smul.u32 2, %s28
          %p287 = scmp.lt.s32.totalorder %s27, 1
          %s288 = scalar_select %p287, %s27, 1
          %p289 = scmp.lt.s32.totalorder %s286, 1
          %s290 = scalar_select %p289, %s286, 1
          %s291 = smul.addr %s290, 2
          %s292 = smul.addr %s288, 4
          %s293 = sadd.s32 %s291, %s292
          %s294 = smul.addr %s293, 8
          %s295 = scalar_lea.vmem %s0, %s294
          %s296 = smul.u32 2, %s28
        $region40: #{tpu_custom_call.1} parent=35 // pred_fallthru
          _
        // Predicated region
        $region41: #{tpu_custom_call.1} parent=35 // pred_check
          %p297 = pneg %p80
        $region42: #{tpu_custom_call.1} parent=35 // pred_check_branch
          %299 = sbr.rel (%p297) target = $region44
        $region43: #{tpu_custom_call.1} parent=35 // pred_region
          %s300 = sand.u32 %s70, 1
          %s301 = scalar_lea.sflag [#allocation3], %s300
          %s302 = sand.u32 %s70, 1
          %s303 = smul.addr %s302, 8
          %s304 = scalar_lea.vmem [#allocation2], %s303
          %s306 = ssub.s32 128, 128
          %307 = vsyncadd %s301, %s306
          %s308 = smul.addr %s27, 128
          %s309 = scalar_lea.hbm %s1, %s308
          %s311 = sshll.u32 %s304, 4
          %s312 = int_to_ptr.vmem [resolvable:$true] %s311
          %314 = dma.hbm_to_vmem [thread:$0]  %s309, 128, %s312, %s301
        $region44: #{tpu_custom_call.1} parent=35 // pred_fallthru
          _
      $region36: #{tpu_custom_call.1} parent=5 // pred_fallthru
        _
      %p315 = scmp.le.s32.totalorder 1, %s20
      %p316 = scmp.lt.s32.totalorder %s20, 3
      %p317 = pnand %p315, %p316
      %p318 = pneg %p317
      // Predicated region
      $region45: #{tpu_custom_call.1} parent=5 // pred_check
        _
      $region46: #{tpu_custom_call.1} parent=5 // pred_check_branch
        %320 = sbr.rel (%p317) target = $region48
      $region47: #{tpu_custom_call.1} parent=5 // pred_region
        %s321 = ssub.s32 %s20, 1
        %s322 = sand.u32 %s73, 1
        %s323 = scalar_lea.sflag [#allocation3], %s322
        %s324 = sand.u32 %s73, 1
        %s325 = smul.addr %s324, 8
        %s326 = scalar_lea.vmem [#allocation2], %s325
        // Predicated region
        $region49: #{tpu_custom_call.1} parent=47 // pred_check
          %p327 = pneg %p86
        $region50: #{tpu_custom_call.1} parent=47 // pred_check_branch
          %329 = sbr.rel (%p327) target = $region52
        $region51: #{tpu_custom_call.1} parent=47 // pred_region
          %330 = dma.done %s323, 128
        $region52: #{tpu_custom_call.1} parent=47 // pred_fallthru
          _
        // Predicated region
        $region53: #{tpu_custom_call.1} parent=47 // pred_check
          %p331 = pneg %p201
        $region54: #{tpu_custom_call.1} parent=47 // pred_check_branch
          %333 = sbr.rel (%p331) target = $region56
        $region55: #{tpu_custom_call.1} parent=47 // pred_region
          %334 = dma.done [#allocation6], 2048
        $region56: #{tpu_custom_call.1} parent=47 // pred_fallthru
          _
        %s335 = smul.u32 2, %s30
        %p336 = scmp.lt.s32.totalorder %s29, 1
        %s337 = scalar_select %p336, %s29, 1
        %p338 = scmp.lt.s32.totalorder %s335, 1
        %s339 = scalar_select %p338, %s335, 1
        %s340 = smul.addr %s339, 2
        %s341 = smul.addr %s337, 4
        %s342 = sadd.s32 %s340, %s341
        %s343 = smul.addr %s342, 8
        %s344 = scalar_lea.vmem %s0, %s343
        %p345 = pneg %p60
        %p346 = pneg %p57
        %s347 = sand.u32 %s73, 1
        %s348 = scalar_lea.sflag [#allocation3], %s347
        %s349 = sand.u32 %s73, 1
        %s350 = smul.addr %s349, 8
        %s351 = scalar_lea.vmem [#allocation2], %s350
        %p352 = pneg %p86
        %p353 = pneg %p83
        %p354 = pneg %p107
        %p355 = pneg %p104
        %p356 = pneg %p128
        %p357 = pneg %p125
        %p358 = scmp.lt.s32.totalorder %s30, 0
        %s359 = scalar_select %p358, %s30, 0
        %s360 = smul.addr %s359, 4
        %s361 = smul.addr %s360, 8
        %s362 = scalar_lea.vmem %s4, %s361
        %p363 = pneg %p154
        %p364 = pneg %p151
        %p365 = scmp.lt.s32.totalorder %s30, 0
        %s366 = scalar_select %p365, %s30, 0
        %s367 = smul.addr %s366, 4
        %s368 = smul.addr %s367, 8
        %s369 = scalar_lea.vmem %s5, %s368
        %p370 = pneg %p180
        %p371 = pneg %p177
        %p372 = pneg %p201
        %p373 = pneg %p198
        %p374 = pneg %p229
        %p375 = pneg %p226
        %s376 = sand.u32 %s216, 1
        %s377 = scalar_lea.sflag [#allocation4], %s376
        %s378 = sand.u32 %s216, 1
        %s379 = smul.addr %s378, 32
        %s380 = scalar_lea.vmem [#allocation7], %s379
        %s381 = smul.u32 2, %s30
        %p382 = scmp.lt.s32.totalorder %s29, 1
        %s383 = scalar_select %p382, %s29, 1
        %p384 = scmp.lt.s32.totalorder %s381, 1
        %s385 = scalar_select %p384, %s381, 1
        %s386 = smul.addr %s385, 2
        %s387 = smul.addr %s383, 4
        %s388 = sadd.s32 %s386, %s387
        %s389 = smul.addr %s388, 8
        %s390 = scalar_lea.vmem %s0, %s389
        %s391 = smul.u32 2, %s30
        %p392 = scmp.lt.s32.totalorder %s30, 0
        %s393 = scalar_select %p392, %s30, 0
        %s394 = smul.addr %s393, 4
        %s395 = smul.addr %s394, 8
        %s396 = scalar_lea.vmem %s4, %s395
        %p397 = scmp.lt.s32.totalorder %s30, 0
        %s398 = scalar_select %p397, %s30, 0
        %s399 = smul.addr %s398, 4
        %s400 = smul.addr %s399, 8
        %s401 = scalar_lea.vmem %s5, %s400
        %s402 = smul.u32 2, %s30
        %v403 = vld [vmem:[%s390] sm:$0xff]
        %v404 = vld [vmem:[%s390 + $0x8] sm:$0xff]
        %v405 = vld [vmem:[%s390 + $0x10] sm:$0xff]
        %v406 = vld [vmem:[%s390 + $0x18] sm:$0xff]
        %v407 = vadd.f32 %v403, %v404
        %408 = vadd.xlane.f32.xlu0 %v407
        %v409 = vpop.xlane.xlu0 %408
        %v410 = vadd.f32 %v405, %v406
        %411 = vadd.xlane.f32.xlu0 %v410
        %v412 = vpop.xlane.xlu0 %411
        %v413 = vmul.f32 %v409, 0.00390625
        %v414 = vmul.f32 %v412, 0.00390625
        %v415 = vmul.f32 %v403, %v403
        %v416 = vmul.f32 %v404, %v404
        %v417 = vmul.f32 %v405, %v405
        %v418 = vmul.f32 %v406, %v406
        %v419 = vadd.f32 %v415, %v416
        %420 = vadd.xlane.f32.xlu0 %v419
        %v421 = vpop.xlane.xlu0 %420
        %v422 = vadd.f32 %v417, %v418
        %423 = vadd.xlane.f32.xlu0 %v422
        %v424 = vpop.xlane.xlu0 %423
        %v425 = vmul.f32 %v421, 0.00390625
        %v426 = vmul.f32 %v424, 0.00390625
        %v427 = vmul.f32 %v413, %v413
        %v428 = vmul.f32 %v414, %v414
        %v429 = vsub.f32 %v425, %v427
        %v430 = vsub.f32 %v426, %v428
        %v431 = vadd.f32 %v429, 1e-05
        %v432 = vadd.f32 %v430, 1e-05
        %v433 = vrsqrt.pop %v431
        %v434 = vrsqrt.pop %v432
        %v435 = vld [vmem:[%s326] sm:$0xff]
        %v436 = vld [vmem:[%s2] sm:$0xff]
        %v437 = vld [vmem:[%s2 + $0x8] sm:$0xff]
        %v438 = vld [vmem:[%s2 + $0x10] sm:$0xff]
        %v439 = vld [vmem:[%s2 + $0x18] sm:$0xff]
        %v440 = vld [vmem:[%s3] sm:$0xff]
        %v441 = vld [vmem:[%s3 + $0x8] sm:$0xff]
        %v442 = vld [vmem:[%s3 + $0x10] sm:$0xff]
        %v443 = vld [vmem:[%s3 + $0x18] sm:$0xff]
        %445 = vset.pattern.permute.xlu0 0
        %446 = vperm.xlu0 %445, %v440
        %v447 = vpop.permute.xlu0 %446
        %450 = vset.pattern.permute.xlu0 0
        %451 = vperm.xlu0 %450, %v441
        %v452 = vpop.permute.xlu0 %451
        %455 = vset.pattern.permute.xlu0 0
        %456 = vperm.xlu0 %455, %v442
        %v457 = vpop.permute.xlu0 %456
        %460 = vset.pattern.permute.xlu0 0
        %461 = vperm.xlu0 %460, %v443
        %v462 = vpop.permute.xlu0 %461
        %vm464 = vcmask 64512
        %v466 = vsel %vm464, %v436, 0
        %v469 = vsel %vm464, %v437, 0
        %v472 = vsel %vm464, %v438, 0
        %v475 = vsel %vm464, %v439, 0
        %477 = vmatprep.subr.mxu0 0.0
        %478 = vmatpush1.msra.mxu0 0.0
        %479 = vmatprep.subr.mxu0 0.0
        %480 = vmatpush1.msra.mxu0 0.0
        %481 = vmatprep.subr.mxu0 0.0
        %482 = vmatpush1.msra.mxu0 0.0
        %483 = vmatprep.subr.mxu0 0.0
        %484 = vmatpush1.msra.mxu0 0.0
        %485 = vmatprep.subr.mxu0 0.0
        %486 = vmatpush1.msra.mxu0 0.0
        %487 = vmatprep.subr.mxu0 0.0
        %488 = vmatpush1.msra.mxu0 0.0
        %489 = vmatprep.subr.mxu0 0.0
        %490 = vmatpush1.msra.mxu0 0.0
        %491 = vmatprep.subr.mxu0 0.0
        %492 = vmatpush1.msra.mxu0 0.0
        %493 = vmatprep.subr.mxu0 0.0
        %494 = vmatpush1.msra.mxu0 0.0
        %495 = vmatprep.subr.mxu0 0.0
        %496 = vmatpush1.msra.mxu0 0.0
        %497 = vmatprep.subr.mxu0 0.0
        %498 = vmatpush1.msra.mxu0 0.0
        %499 = vmatprep.subr.mxu0 0.0
        %500 = vmatpush1.msra.mxu0 0.0
        %501 = vmatprep.subr.mxu0 0.0
        %502 = vmatpush1.msra.mxu0 0.0
        %503 = vmatprep.subr.mxu0 0.0
        %504 = vmatpush1.msra.mxu0 0.0
        %505 = vmatprep.subr.mxu0 0.0
        %506 = vmatpush1.msra.mxu0 0.0
        %507 = vmatprep.subr.mxu0 0.0
        %508 = vmatpush1.msra.mxu0 %v435
        %509 = vmatprep.subr.mxu0 0.0
        %510 = vmatpush2.msra.mxu0 0.0
        %511 = vmatprep.subr.mxu0 0.0
        %512 = vmatpush2.msra.mxu0 0.0
        %513 = vmatprep.subr.mxu0 0.0
        %514 = vmatpush2.msra.mxu0 0.0
        %515 = vmatprep.subr.mxu0 0.0
        %516 = vmatpush2.msra.mxu0 0.0
        %517 = vmatprep.subr.mxu0 0.0
        %518 = vmatpush2.msra.mxu0 0.0
        %519 = vmatprep.subr.mxu0 0.0
        %520 = vmatpush2.msra.mxu0 0.0
        %521 = vmatprep.subr.mxu0 0.0
        %522 = vmatpush2.msra.mxu0 0.0
        %523 = vmatprep.subr.mxu0 0.0
        %524 = vmatpush2.msra.mxu0 0.0
        %525 = vmatprep.subr.mxu0 0.0
        %526 = vmatpush2.msra.mxu0 0.0
        %527 = vmatprep.subr.mxu0 0.0
        %528 = vmatpush2.msra.mxu0 0.0
        %529 = vmatprep.subr.mxu0 0.0
        %530 = vmatpush2.msra.mxu0 0.0
        %531 = vmatprep.subr.mxu0 0.0
        %532 = vmatpush2.msra.mxu0 0.0
        %533 = vmatprep.subr.mxu0 0.0
        %534 = vmatpush2.msra.mxu0 0.0
        %535 = vmatprep.subr.mxu0 0.0
        %536 = vmatpush2.msra.mxu0 0.0
        %537 = vmatprep.subr.mxu0 0.0
        %538 = vmatpush2.msra.mxu0 0.0
        %539 = vmatprep.subr.mxu0 0.0
        %540 = vmatpush2.msra.mxu0 0.0
        %541 = vmatprep.mubr.f32.mxu0 0.0
        %542 = vmatmul.mubr.f32.gmra.mxu0 %v466
        %v543 = vpop.f32.mrf.mxu0
        %v544 = vadd.f32 %v447, %v543
        %v545 = vpop.f32.mrf.mxu0
        %546 = vmatprep.mubr.f32.mxu0 0.0
        %547 = vmatmul.mubr.f32.gmra.mxu0 %v469
        %v548 = vpop.f32.mrf.mxu0
        %v549 = vadd.f32 %v452, %v548
        %v550 = vpop.f32.mrf.mxu0
        %551 = vmatprep.mubr.f32.mxu0 0.0
        %552 = vmatmul.mubr.f32.gmra.mxu0 %v472
        %v553 = vpop.f32.mrf.mxu0
        %v554 = vadd.f32 %v457, %v553
        %v555 = vpop.f32.mrf.mxu0
        %556 = vmatprep.mubr.f32.mxu0 0.0
        %557 = vmatmul.mubr.f32.gmra.mxu0 %v475
        %v558 = vpop.f32.mrf.mxu0
        %v559 = vadd.f32 %v462, %v558
        %v560 = vpop.f32.mrf.mxu0
        %561 = vdwg.mxu0
        %v562 = vmax.f32 %v544, 0.0
        %v563 = vmax.f32 %v549, 0.0
        %v564 = vmax.f32 %v554, 0.0
        %v565 = vmax.f32 %v559, 0.0
        %v566 = vld [vmem:[%s396] sm:$0xff]
        %v567 = vld [vmem:[%s396 + $0x8] sm:$0xff]
        %v568 = vld [vmem:[%s396 + $0x10] sm:$0xff]
        %v569 = vld [vmem:[%s396 + $0x18] sm:$0xff]
        %v570 = vld [vmem:[%s401] sm:$0xff]
        %v571 = vld [vmem:[%s401 + $0x8] sm:$0xff]
        %v572 = vld [vmem:[%s401 + $0x10] sm:$0xff]
        %v573 = vld [vmem:[%s401 + $0x18] sm:$0xff]
        %575 = vset.pattern.permute.xlu0 0
        %576 = vperm.xlu0 %575, %v570
        %v577 = vpop.permute.xlu0 %576
        %580 = vset.pattern.permute.xlu0 0
        %581 = vperm.xlu0 %580, %v571
        %v582 = vpop.permute.xlu0 %581
        %585 = vset.pattern.permute.xlu0 0
        %586 = vperm.xlu0 %585, %v572
        %v587 = vpop.permute.xlu0 %586
        %590 = vset.pattern.permute.xlu0 0
        %591 = vperm.xlu0 %590, %v573
        %v592 = vpop.permute.xlu0 %591
        %vm594 = vcmask 261120
        %v596 = vsel %vm594, %v566, 0
        %v599 = vsel %vm594, %v567, 0
        %v602 = vsel %vm594, %v568, 0
        %v605 = vsel %vm594, %v569, 0
        %607 = vmatprep.subr.mxu0 0.0
        %608 = vmatpush1.msra.mxu0 0.0
        %609 = vmatprep.subr.mxu0 0.0
        %610 = vmatpush1.msra.mxu0 0.0
        %611 = vmatprep.subr.mxu0 0.0
        %612 = vmatpush1.msra.mxu0 0.0
        %613 = vmatprep.subr.mxu0 0.0
        %614 = vmatpush1.msra.mxu0 0.0
        %615 = vmatprep.subr.mxu0 0.0
        %616 = vmatpush1.msra.mxu0 0.0
        %617 = vmatprep.subr.mxu0 0.0
        %618 = vmatpush1.msra.mxu0 0.0
        %619 = vmatprep.subr.mxu0 0.0
        %620 = vmatpush1.msra.mxu0 0.0
        %621 = vmatprep.subr.mxu0 0.0
        %622 = vmatpush1.msra.mxu0 0.0
        %623 = vmatprep.subr.mxu0 0.0
        %624 = vmatpush1.msra.mxu0 0.0
        %625 = vmatprep.subr.mxu0 0.0
        %626 = vmatpush1.msra.mxu0 0.0
        %627 = vmatprep.subr.mxu0 0.0
        %628 = vmatpush1.msra.mxu0 0.0
        %629 = vmatprep.subr.mxu0 0.0
        %630 = vmatpush1.msra.mxu0 0.0
        %631 = vmatprep.subr.mxu0 0.0
        %632 = vmatpush1.msra.mxu0 %v565
        %633 = vmatprep.subr.mxu0 0.0
        %634 = vmatpush1.msra.mxu0 %v564
        %635 = vmatprep.subr.mxu0 0.0
        %636 = vmatpush1.msra.mxu0 %v563
        %637 = vmatprep.subr.mxu0 0.0
        %638 = vmatpush1.msra.mxu0 %v562
        %639 = vmatprep.subr.mxu0 0.0
        %640 = vmatpush2.msra.mxu0 0.0
        %641 = vmatprep.subr.mxu0 0.0
        %642 = vmatpush2.msra.mxu0 0.0
        %643 = vmatprep.subr.mxu0 0.0
        %644 = vmatpush2.msra.mxu0 0.0
        %645 = vmatprep.subr.mxu0 0.0
        %646 = vmatpush2.msra.mxu0 0.0
        %647 = vmatprep.subr.mxu0 0.0
        %648 = vmatpush2.msra.mxu0 0.0
        %649 = vmatprep.subr.mxu0 0.0
        %650 = vmatpush2.msra.mxu0 0.0
        %651 = vmatprep.subr.mxu0 0.0
        %652 = vmatpush2.msra.mxu0 0.0
        %653 = vmatprep.subr.mxu0 0.0
        %654 = vmatpush2.msra.mxu0 0.0
        %655 = vmatprep.subr.mxu0 0.0
        %656 = vmatpush2.msra.mxu0 0.0
        %657 = vmatprep.subr.mxu0 0.0
        %658 = vmatpush2.msra.mxu0 0.0
        %659 = vmatprep.subr.mxu0 0.0
        %660 = vmatpush2.msra.mxu0 0.0
        %661 = vmatprep.subr.mxu0 0.0
        %662 = vmatpush2.msra.mxu0 0.0
        %663 = vmatprep.subr.mxu0 0.0
        %664 = vmatpush2.msra.mxu0 0.0
        %665 = vmatprep.subr.mxu0 0.0
        %666 = vmatpush2.msra.mxu0 0.0
        %667 = vmatprep.subr.mxu0 0.0
        %668 = vmatpush2.msra.mxu0 0.0
        %669 = vmatprep.subr.mxu0 0.0
        %670 = vmatpush2.msra.mxu0 0.0
        %671 = vmatprep.mubr.f32.mxu0 0.0
        %672 = vmatmul.mubr.f32.gmra.mxu0 %v596
        %v673 = vpop.f32.mrf.mxu0
        %v674 = vadd.f32 %v577, %v673
        %v675 = vpop.f32.mrf.mxu0
        %676 = vmatprep.mubr.f32.mxu0 0.0
        %677 = vmatmul.mubr.f32.gmra.mxu0 %v599
        %v678 = vpop.f32.mrf.mxu0
        %v679 = vadd.f32 %v582, %v678
        %v680 = vpop.f32.mrf.mxu0
        %681 = vmatprep.mubr.f32.mxu0 0.0
        %682 = vmatmul.mubr.f32.gmra.mxu0 %v602
        %v683 = vpop.f32.mrf.mxu0
        %v684 = vadd.f32 %v587, %v683
        %v685 = vpop.f32.mrf.mxu0
        %686 = vmatprep.mubr.f32.mxu0 0.0
        %687 = vmatmul.mubr.f32.gmra.mxu0 %v605
        %v688 = vpop.f32.mrf.mxu0
        %v689 = vadd.f32 %v592, %v688
        %v690 = vpop.f32.mrf.mxu0
        %691 = vdwg.mxu0
        %v692 = vld [vmem:[#allocation5] sm:$0xff]
        %v693 = vld [vmem:[#allocation5 + $0x8] sm:$0xff]
        %v694 = vld [vmem:[#allocation5 + $0x10] sm:$0xff]
        %v695 = vld [vmem:[#allocation5 + $0x18] sm:$0xff]
        %v696 = vld [vmem:[#allocation5 + $0x20] sm:$0xff]
        %v697 = vld [vmem:[#allocation5 + $0x28] sm:$0xff]
        %v698 = vld [vmem:[#allocation5 + $0x30] sm:$0xff]
        %v699 = vld [vmem:[#allocation5 + $0x38] sm:$0xff]
        %v700 = vld [vmem:[#allocation5 + $0x40] sm:$0xff]
        %v701 = vld [vmem:[#allocation5 + $0x48] sm:$0xff]
        %v702 = vld [vmem:[#allocation5 + $0x50] sm:$0xff]
        %v703 = vld [vmem:[#allocation5 + $0x58] sm:$0xff]
        %v704 = vld [vmem:[#allocation5 + $0x60] sm:$0xff]
        %v705 = vld [vmem:[#allocation5 + $0x68] sm:$0xff]
        %v706 = vld [vmem:[#allocation5 + $0x70] sm:$0xff]
        %v707 = vld [vmem:[#allocation5 + $0x78] sm:$0xff]
        %vm708 = vcmask 523264
        %v710 = vsel %vm708, %v674, 0
        %v713 = vsel %vm708, %v679, 0
        %v716 = vsel %vm708, %v684, 0
        %v719 = vsel %vm708, %v689, 0
        %721 = vmatprep.subr.mxu0 0.0
        %722 = vmatpush1.msra.mxu0 0.0
        %723 = vmatprep.subr.mxu0 0.0
        %724 = vmatpush1.msra.mxu0 0.0
        %725 = vmatprep.subr.mxu0 0.0
        %726 = vmatpush1.msra.mxu0 0.0
        %727 = vmatprep.subr.mxu0 0.0
        %728 = vmatpush1.msra.mxu0 0.0
        %729 = vmatprep.subr.mxu0 0.0
        %730 = vmatpush1.msra.mxu0 0.0
        %731 = vmatprep.subr.mxu0 0.0
        %732 = vmatpush1.msra.mxu0 0.0
        %733 = vmatprep.subr.mxu0 0.0
        %734 = vmatpush1.msra.mxu0 0.0
        %735 = vmatprep.subr.mxu0 0.0
        %736 = vmatpush1.msra.mxu0 0.0
        %v737 = vand.u32 %v707, 4294901760
        %738 = vmatprep.subr.mxu0 %v737
        %v739 = vand.u32 %v706, 4294901760
        %740 = vmatpush1.msra.mxu0 %v739
        %v741 = vand.u32 %v705, 4294901760
        %742 = vmatprep.subr.mxu0 %v741
        %v743 = vand.u32 %v704, 4294901760
        %744 = vmatpush1.msra.mxu0 %v743
        %v745 = vand.u32 %v703, 4294901760
        %746 = vmatprep.subr.mxu0 %v745
        %v747 = vand.u32 %v702, 4294901760
        %748 = vmatpush1.msra.mxu0 %v747
        %v749 = vand.u32 %v701, 4294901760
        %750 = vmatprep.subr.mxu0 %v749
        %v751 = vand.u32 %v700, 4294901760
        %752 = vmatpush1.msra.mxu0 %v751
        %v753 = vand.u32 %v699, 4294901760
        %754 = vmatprep.subr.mxu0 %v753
        %v755 = vand.u32 %v698, 4294901760
        %756 = vmatpush1.msra.mxu0 %v755
        %v757 = vand.u32 %v697, 4294901760
        %758 = vmatprep.subr.mxu0 %v757
        %v759 = vand.u32 %v696, 4294901760
        %760 = vmatpush1.msra.mxu0 %v759
        %v761 = vand.u32 %v695, 4294901760
        %762 = vmatprep.subr.mxu0 %v761
        %v763 = vand.u32 %v694, 4294901760
        %764 = vmatpush1.msra.mxu0 %v763
        %v765 = vand.u32 %v693, 4294901760
        %766 = vmatprep.subr.mxu0 %v765
        %v767 = vand.u32 %v692, 4294901760
        %768 = vmatpush1.msra.mxu0 %v767
        %769 = vmatprep.subr.mxu0 0.0
        %770 = vmatpush2.msra.mxu0 0.0
        %771 = vmatprep.subr.mxu0 0.0
        %772 = vmatpush2.msra.mxu0 0.0
        %773 = vmatprep.subr.mxu0 0.0
        %774 = vmatpush2.msra.mxu0 0.0
        %775 = vmatprep.subr.mxu0 0.0
        %776 = vmatpush2.msra.mxu0 0.0
        %777 = vmatprep.subr.mxu0 0.0
        %778 = vmatpush2.msra.mxu0 0.0
        %779 = vmatprep.subr.mxu0 0.0
        %780 = vmatpush2.msra.mxu0 0.0
        %781 = vmatprep.subr.mxu0 0.0
        %782 = vmatpush2.msra.mxu0 0.0
        %783 = vmatprep.subr.mxu0 0.0
        %784 = vmatpush2.msra.mxu0 0.0
        %785 = vmatprep.subr.mxu0 0.0
        %786 = vmatpush2.msra.mxu0 0.0
        %787 = vmatprep.subr.mxu0 0.0
        %788 = vmatpush2.msra.mxu0 0.0
        %789 = vmatprep.subr.mxu0 0.0
        %790 = vmatpush2.msra.mxu0 0.0
        %791 = vmatprep.subr.mxu0 0.0
        %792 = vmatpush2.msra.mxu0 0.0
        %793 = vmatprep.subr.mxu0 0.0
        %794 = vmatpush2.msra.mxu0 0.0
        %795 = vmatprep.subr.mxu0 0.0
        %796 = vmatpush2.msra.mxu0 0.0
        %797 = vmatprep.subr.mxu0 0.0
        %798 = vmatpush2.msra.mxu0 0.0
        %799 = vmatprep.subr.mxu0 0.0
        %800 = vmatpush2.msra.mxu0 0.0
        %801 = vmatprep.mubr.f32.mxu0 0.0
        %v802 = vand.u32 %v710, 4294901760
        %v803 = vsub.f32 %v710, %v802
        %v804 = vand.u32 %v803, 4294901760
        %v805 = vsub.f32 %v803, %v804
        %v806 = vand.u32 %v805, 4294901760
        %807 = vmatmul.mubr.f32.gmra.mxu0 %v806
        %v808 = vpop.f32.mrf.mxu0
        %v809 = vadd.f32 0.0, %v808
        %v810 = vpop.f32.mrf.mxu0
        %v811 = vadd.f32 0.0, %v810
        %812 = vmatprep.mubr.f32.mxu0 0.0
        %v813 = vand.u32 %v713, 4294901760
        %v814 = vsub.f32 %v713, %v813
        %v815 = vand.u32 %v814, 4294901760
        %v816 = vsub.f32 %v814, %v815
        %v817 = vand.u32 %v816, 4294901760
        %818 = vmatmul.mubr.f32.gmra.mxu0 %v817
        %v819 = vpop.f32.mrf.mxu0
        %v820 = vadd.f32 0.0, %v819
        %v821 = vpop.f32.mrf.mxu0
        %v822 = vadd.f32 0.0, %v821
        %823 = vmatprep.mubr.f32.mxu0 0.0
        %v824 = vand.u32 %v716, 4294901760
        %v825 = vsub.f32 %v716, %v824
        %v826 = vand.u32 %v825, 4294901760
        %v827 = vsub.f32 %v825, %v826
        %v828 = vand.u32 %v827, 4294901760
        %829 = vmatmul.mubr.f32.gmra.mxu0 %v828
        %v830 = vpop.f32.mrf.mxu0
        %v831 = vadd.f32 0.0, %v830
        %v832 = vpop.f32.mrf.mxu0
        %v833 = vadd.f32 0.0, %v832
        %834 = vmatprep.mubr.f32.mxu0 0.0
        %v835 = vand.u32 %v719, 4294901760
        %v836 = vsub.f32 %v719, %v835
        %v837 = vand.u32 %v836, 4294901760
        %v838 = vsub.f32 %v836, %v837
        %v839 = vand.u32 %v838, 4294901760
        %840 = vmatmul.mubr.f32.gmra.mxu0 %v839
        %v841 = vpop.f32.mrf.mxu0
        %v842 = vadd.f32 0.0, %v841
        %v843 = vpop.f32.mrf.mxu0
        %v844 = vadd.f32 0.0, %v843
        %845 = vdwg.mxu0
        %846 = vmatprep.subr.mxu0 0.0
        %847 = vmatpush1.msra.mxu0 0.0
        %848 = vmatprep.subr.mxu0 0.0
        %849 = vmatpush1.msra.mxu0 0.0
        %850 = vmatprep.subr.mxu0 0.0
        %851 = vmatpush1.msra.mxu0 0.0
        %852 = vmatprep.subr.mxu0 0.0
        %853 = vmatpush1.msra.mxu0 0.0
        %854 = vmatprep.subr.mxu0 0.0
        %855 = vmatpush1.msra.mxu0 0.0
        %856 = vmatprep.subr.mxu0 0.0
        %857 = vmatpush1.msra.mxu0 0.0
        %858 = vmatprep.subr.mxu0 0.0
        %859 = vmatpush1.msra.mxu0 0.0
        %860 = vmatprep.subr.mxu0 0.0
        %861 = vmatpush1.msra.mxu0 0.0
        %v862 = vand.u32 %v707, 4294901760
        %v863 = vsub.f32 %v707, %v862
        %v864 = vand.u32 %v863, 4294901760
        %v865 = vsub.f32 %v863, %v864
        %v866 = vand.u32 %v865, 4294901760
        %867 = vmatprep.subr.mxu0 %v866
        %v868 = vand.u32 %v706, 4294901760
        %v869 = vsub.f32 %v706, %v868
        %v870 = vand.u32 %v869, 4294901760
        %v871 = vsub.f32 %v869, %v870
        %v872 = vand.u32 %v871, 4294901760
        %873 = vmatpush1.msra.mxu0 %v872
        %v874 = vand.u32 %v705, 4294901760
        %v875 = vsub.f32 %v705, %v874
        %v876 = vand.u32 %v875, 4294901760
        %v877 = vsub.f32 %v875, %v876
        %v878 = vand.u32 %v877, 4294901760
        %879 = vmatprep.subr.mxu0 %v878
        %v880 = vand.u32 %v704, 4294901760
        %v881 = vsub.f32 %v704, %v880
        %v882 = vand.u32 %v881, 4294901760
        %v883 = vsub.f32 %v881, %v882
        %v884 = vand.u32 %v883, 4294901760
        %885 = vmatpush1.msra.mxu0 %v884
        %v886 = vand.u32 %v703, 4294901760
        %v887 = vsub.f32 %v703, %v886
        %v888 = vand.u32 %v887, 4294901760
        %v889 = vsub.f32 %v887, %v888
        %v890 = vand.u32 %v889, 4294901760
        %891 = vmatprep.subr.mxu0 %v890
        %v892 = vand.u32 %v702, 4294901760
        %v893 = vsub.f32 %v702, %v892
        %v894 = vand.u32 %v893, 4294901760
        %v895 = vsub.f32 %v893, %v894
        %v896 = vand.u32 %v895, 4294901760
        %897 = vmatpush1.msra.mxu0 %v896
        %v898 = vand.u32 %v701, 4294901760
        %v899 = vsub.f32 %v701, %v898
        %v900 = vand.u32 %v899, 4294901760
        %v901 = vsub.f32 %v899, %v900
        %v902 = vand.u32 %v901, 4294901760
        %903 = vmatprep.subr.mxu0 %v902
        %v904 = vand.u32 %v700, 4294901760
        %v905 = vsub.f32 %v700, %v904
        %v906 = vand.u32 %v905, 4294901760
        %v907 = vsub.f32 %v905, %v906
        %v908 = vand.u32 %v907, 4294901760
        %909 = vmatpush1.msra.mxu0 %v908
        %v910 = vand.u32 %v699, 4294901760
        %v911 = vsub.f32 %v699, %v910
        %v912 = vand.u32 %v911, 4294901760
        %v913 = vsub.f32 %v911, %v912
        %v914 = vand.u32 %v913, 4294901760
        %915 = vmatprep.subr.mxu0 %v914
        %v916 = vand.u32 %v698, 4294901760
        %v917 = vsub.f32 %v698, %v916
        %v918 = vand.u32 %v917, 4294901760
        %v919 = vsub.f32 %v917, %v918
        %v920 = vand.u32 %v919, 4294901760
        %921 = vmatpush1.msra.mxu0 %v920
        %v922 = vand.u32 %v697, 4294901760
        %v923 = vsub.f32 %v697, %v922
        %v924 = vand.u32 %v923, 4294901760
        %v925 = vsub.f32 %v923, %v924
        %v926 = vand.u32 %v925, 4294901760
        %927 = vmatprep.subr.mxu0 %v926
        %v928 = vand.u32 %v696, 4294901760
        %v929 = vsub.f32 %v696, %v928
        %v930 = vand.u32 %v929, 4294901760
        %v931 = vsub.f32 %v929, %v930
        %v932 = vand.u32 %v931, 4294901760
        %933 = vmatpush1.msra.mxu0 %v932
        %v934 = vand.u32 %v695, 4294901760
        %v935 = vsub.f32 %v695, %v934
        %v936 = vand.u32 %v935, 4294901760
        %v937 = vsub.f32 %v935, %v936
        %v938 = vand.u32 %v937, 4294901760
        %939 = vmatprep.subr.mxu0 %v938
        %v940 = vand.u32 %v694, 4294901760
        %v941 = vsub.f32 %v694, %v940
        %v942 = vand.u32 %v941, 4294901760
        %v943 = vsub.f32 %v941, %v942
        %v944 = vand.u32 %v943, 4294901760
        %945 = vmatpush1.msra.mxu0 %v944
        %v946 = vand.u32 %v693, 4294901760
        %v947 = vsub.f32 %v693, %v946
        %v948 = vand.u32 %v947, 4294901760
        %v949 = vsub.f32 %v947, %v948
        %v950 = vand.u32 %v949, 4294901760
        %951 = vmatprep.subr.mxu0 %v950
        %v952 = vand.u32 %v692, 4294901760
        %v953 = vsub.f32 %v692, %v952
        %v954 = vand.u32 %v953, 4294901760
        %v955 = vsub.f32 %v953, %v954
        %v956 = vand.u32 %v955, 4294901760
        %957 = vmatpush1.msra.mxu0 %v956
        %958 = vmatprep.subr.mxu0 0.0
        %959 = vmatpush2.msra.mxu0 0.0
        %960 = vmatprep.subr.mxu0 0.0
        %961 = vmatpush2.msra.mxu0 0.0
        %962 = vmatprep.subr.mxu0 0.0
        %963 = vmatpush2.msra.mxu0 0.0
        %964 = vmatprep.subr.mxu0 0.0
        %965 = vmatpush2.msra.mxu0 0.0
        %966 = vmatprep.subr.mxu0 0.0
        %967 = vmatpush2.msra.mxu0 0.0
        %968 = vmatprep.subr.mxu0 0.0
        %969 = vmatpush2.msra.mxu0 0.0
        %970 = vmatprep.subr.mxu0 0.0
        %971 = vmatpush2.msra.mxu0 0.0
        %972 = vmatprep.subr.mxu0 0.0
        %973 = vmatpush2.msra.mxu0 0.0
        %974 = vmatprep.subr.mxu0 0.0
        %975 = vmatpush2.msra.mxu0 0.0
        %976 = vmatprep.subr.mxu0 0.0
        %977 = vmatpush2.msra.mxu0 0.0
        %978 = vmatprep.subr.mxu0 0.0
        %979 = vmatpush2.msra.mxu0 0.0
        %980 = vmatprep.subr.mxu0 0.0
        %981 = vmatpush2.msra.mxu0 0.0
        %982 = vmatprep.subr.mxu0 0.0
        %983 = vmatpush2.msra.mxu0 0.0
        %984 = vmatprep.subr.mxu0 0.0
        %985 = vmatpush2.msra.mxu0 0.0
        %986 = vmatprep.subr.mxu0 0.0
        %987 = vmatpush2.msra.mxu0 0.0
        %988 = vmatprep.subr.mxu0 0.0
        %989 = vmatpush2.msra.mxu0 0.0
        %990 = vmatprep.mubr.f32.mxu0 0.0
        %v991 = vand.u32 %v710, 4294901760
        %992 = vmatmul.mubr.f32.gmra.mxu0 %v991
        %v993 = vpop.f32.mrf.mxu0
        %v994 = vadd.f32 %v809, %v993
        %v995 = vpop.f32.mrf.mxu0
        %v996 = vadd.f32 %v811, %v995
        %997 = vmatprep.mubr.f32.mxu0 0.0
        %v998 = vand.u32 %v713, 4294901760
        %999 = vmatmul.mubr.f32.gmra.mxu0 %v998
        %v1000 = vpop.f32.mrf.mxu0
        %v1001 = vadd.f32 %v820, %v1000
        %v1002 = vpop.f32.mrf.mxu0
        %v1003 = vadd.f32 %v822, %v1002
        %1004 = vmatprep.mubr.f32.mxu0 0.0
        %v1005 = vand.u32 %v716, 4294901760
        %1006 = vmatmul.mubr.f32.gmra.mxu0 %v1005
        %v1007 = vpop.f32.mrf.mxu0
        %v1008 = vadd.f32 %v831, %v1007
        %v1009 = vpop.f32.mrf.mxu0
        %v1010 = vadd.f32 %v833, %v1009
        %1011 = vmatprep.mubr.f32.mxu0 0.0
        %v1012 = vand.u32 %v719, 4294901760
        %1013 = vmatmul.mubr.f32.gmra.mxu0 %v1012
        %v1014 = vpop.f32.mrf.mxu0
        %v1015 = vadd.f32 %v842, %v1014
        %v1016 = vpop.f32.mrf.mxu0
        %v1017 = vadd.f32 %v844, %v1016
        %1018 = vdwg.mxu0
        %1019 = vmatprep.subr.mxu0 0.0
        %1020 = vmatpush1.msra.mxu0 0.0
        %1021 = vmatprep.subr.mxu0 0.0
        %1022 = vmatpush1.msra.mxu0 0.0
        %1023 = vmatprep.subr.mxu0 0.0
        %1024 = vmatpush1.msra.mxu0 0.0
        %1025 = vmatprep.subr.mxu0 0.0
        %1026 = vmatpush1.msra.mxu0 0.0
        %1027 = vmatprep.subr.mxu0 0.0
        %1028 = vmatpush1.msra.mxu0 0.0
        %1029 = vmatprep.subr.mxu0 0.0
        %1030 = vmatpush1.msra.mxu0 0.0
        %1031 = vmatprep.subr.mxu0 0.0
        %1032 = vmatpush1.msra.mxu0 0.0
        %1033 = vmatprep.subr.mxu0 0.0
        %1034 = vmatpush1.msra.mxu0 0.0
        %v1035 = vand.u32 %v707, 4294901760
        %v1036 = vsub.f32 %v707, %v1035
        %1037 = vmatprep.subr.mxu0 %v1036
        %v1038 = vand.u32 %v706, 4294901760
        %v1039 = vsub.f32 %v706, %v1038
        %1040 = vmatpush1.msra.mxu0 %v1039
        %v1041 = vand.u32 %v705, 4294901760
        %v1042 = vsub.f32 %v705, %v1041
        %1043 = vmatprep.subr.mxu0 %v1042
        %v1044 = vand.u32 %v704, 4294901760
        %v1045 = vsub.f32 %v704, %v1044
        %1046 = vmatpush1.msra.mxu0 %v1045
        %v1047 = vand.u32 %v703, 4294901760
        %v1048 = vsub.f32 %v703, %v1047
        %1049 = vmatprep.subr.mxu0 %v1048
        %v1050 = vand.u32 %v702, 4294901760
        %v1051 = vsub.f32 %v702, %v1050
        %1052 = vmatpush1.msra.mxu0 %v1051
        %v1053 = vand.u32 %v701, 4294901760
        %v1054 = vsub.f32 %v701, %v1053
        %1055 = vmatprep.subr.mxu0 %v1054
        %v1056 = vand.u32 %v700, 4294901760
        %v1057 = vsub.f32 %v700, %v1056
        %1058 = vmatpush1.msra.mxu0 %v1057
        %v1059 = vand.u32 %v699, 4294901760
        %v1060 = vsub.f32 %v699, %v1059
        %1061 = vmatprep.subr.mxu0 %v1060
        %v1062 = vand.u32 %v698, 4294901760
        %v1063 = vsub.f32 %v698, %v1062
        %1064 = vmatpush1.msra.mxu0 %v1063
        %v1065 = vand.u32 %v697, 4294901760
        %v1066 = vsub.f32 %v697, %v1065
        %1067 = vmatprep.subr.mxu0 %v1066
        %v1068 = vand.u32 %v696, 4294901760
        %v1069 = vsub.f32 %v696, %v1068
        %1070 = vmatpush1.msra.mxu0 %v1069
        %v1071 = vand.u32 %v695, 4294901760
        %v1072 = vsub.f32 %v695, %v1071
        %1073 = vmatprep.subr.mxu0 %v1072
        %v1074 = vand.u32 %v694, 4294901760
        %v1075 = vsub.f32 %v694, %v1074
        %1076 = vmatpush1.msra.mxu0 %v1075
        %v1077 = vand.u32 %v693, 4294901760
        %v1078 = vsub.f32 %v693, %v1077
        %1079 = vmatprep.subr.mxu0 %v1078
        %v1080 = vand.u32 %v692, 4294901760
        %v1081 = vsub.f32 %v692, %v1080
        %1082 = vmatpush1.msra.mxu0 %v1081
        %1083 = vmatprep.subr.mxu0 0.0
        %1084 = vmatpush2.msra.mxu0 0.0
        %1085 = vmatprep.subr.mxu0 0.0
        %1086 = vmatpush2.msra.mxu0 0.0
        %1087 = vmatprep.subr.mxu0 0.0
        %1088 = vmatpush2.msra.mxu0 0.0
        %1089 = vmatprep.subr.mxu0 0.0
        %1090 = vmatpush2.msra.mxu0 0.0
        %1091 = vmatprep.subr.mxu0 0.0
        %1092 = vmatpush2.msra.mxu0 0.0
        %1093 = vmatprep.subr.mxu0 0.0
        %1094 = vmatpush2.msra.mxu0 0.0
        %1095 = vmatprep.subr.mxu0 0.0
        %1096 = vmatpush2.msra.mxu0 0.0
        %1097 = vmatprep.subr.mxu0 0.0
        %1098 = vmatpush2.msra.mxu0 0.0
        %1099 = vmatprep.subr.mxu0 0.0
        %1100 = vmatpush2.msra.mxu0 0.0
        %1101 = vmatprep.subr.mxu0 0.0
        %1102 = vmatpush2.msra.mxu0 0.0
        %1103 = vmatprep.subr.mxu0 0.0
        %1104 = vmatpush2.msra.mxu0 0.0
        %1105 = vmatprep.subr.mxu0 0.0
        %1106 = vmatpush2.msra.mxu0 0.0
        %1107 = vmatprep.subr.mxu0 0.0
        %1108 = vmatpush2.msra.mxu0 0.0
        %1109 = vmatprep.subr.mxu0 0.0
        %1110 = vmatpush2.msra.mxu0 0.0
        %1111 = vmatprep.subr.mxu0 0.0
        %1112 = vmatpush2.msra.mxu0 0.0
        %1113 = vmatprep.subr.mxu0 0.0
        %1114 = vmatpush2.msra.mxu0 0.0
        %1115 = vmatprep.mubr.f32.mxu0 0.0
        %v1116 = vand.u32 %v710, 4294901760
        %v1117 = vsub.f32 %v710, %v1116
        %1118 = vmatmul.mubr.f32.gmra.mxu0 %v1117
        %v1119 = vpop.f32.mrf.mxu0
        %v1120 = vadd.f32 %v994, %v1119
        %v1121 = vpop.f32.mrf.mxu0
        %v1122 = vadd.f32 %v996, %v1121
        %1123 = vmatprep.mubr.f32.mxu0 0.0
        %v1124 = vand.u32 %v713, 4294901760
        %v1125 = vsub.f32 %v713, %v1124
        %1126 = vmatmul.mubr.f32.gmra.mxu0 %v1125
        %v1127 = vpop.f32.mrf.mxu0
        %v1128 = vadd.f32 %v1001, %v1127
        %v1129 = vpop.f32.mrf.mxu0
        %v1130 = vadd.f32 %v1003, %v1129
        %1131 = vmatprep.mubr.f32.mxu0 0.0
        %v1132 = vand.u32 %v716, 4294901760
        %v1133 = vsub.f32 %v716, %v1132
        %1134 = vmatmul.mubr.f32.gmra.mxu0 %v1133
        %v1135 = vpop.f32.mrf.mxu0
        %v1136 = vadd.f32 %v1008, %v1135
        %v1137 = vpop.f32.mrf.mxu0
        %v1138 = vadd.f32 %v1010, %v1137
        %1139 = vmatprep.mubr.f32.mxu0 0.0
        %v1140 = vand.u32 %v719, 4294901760
        %v1141 = vsub.f32 %v719, %v1140
        %1142 = vmatmul.mubr.f32.gmra.mxu0 %v1141
        %v1143 = vpop.f32.mrf.mxu0
        %v1144 = vadd.f32 %v1015, %v1143
        %v1145 = vpop.f32.mrf.mxu0
        %v1146 = vadd.f32 %v1017, %v1145
        %1147 = vdwg.mxu0
        %1148 = vmatprep.subr.mxu0 0.0
        %1149 = vmatpush1.msra.mxu0 0.0
        %1150 = vmatprep.subr.mxu0 0.0
        %1151 = vmatpush1.msra.mxu0 0.0
        %1152 = vmatprep.subr.mxu0 0.0
        %1153 = vmatpush1.msra.mxu0 0.0
        %1154 = vmatprep.subr.mxu0 0.0
        %1155 = vmatpush1.msra.mxu0 0.0
        %1156 = vmatprep.subr.mxu0 0.0
        %1157 = vmatpush1.msra.mxu0 0.0
        %1158 = vmatprep.subr.mxu0 0.0
        %1159 = vmatpush1.msra.mxu0 0.0
        %1160 = vmatprep.subr.mxu0 0.0
        %1161 = vmatpush1.msra.mxu0 0.0
        %1162 = vmatprep.subr.mxu0 0.0
        %1163 = vmatpush1.msra.mxu0 0.0
        %v1164 = vand.u32 %v707, 4294901760
        %1165 = vmatprep.subr.mxu0 %v1164
        %v1166 = vand.u32 %v706, 4294901760
        %1167 = vmatpush1.msra.mxu0 %v1166
        %v1168 = vand.u32 %v705, 4294901760
        %1169 = vmatprep.subr.mxu0 %v1168
        %v1170 = vand.u32 %v704, 4294901760
        %1171 = vmatpush1.msra.mxu0 %v1170
        %v1172 = vand.u32 %v703, 4294901760
        %1173 = vmatprep.subr.mxu0 %v1172
        %v1174 = vand.u32 %v702, 4294901760
        %1175 = vmatpush1.msra.mxu0 %v1174
        %v1176 = vand.u32 %v701, 4294901760
        %1177 = vmatprep.subr.mxu0 %v1176
        %v1178 = vand.u32 %v700, 4294901760
        %1179 = vmatpush1.msra.mxu0 %v1178
        %v1180 = vand.u32 %v699, 4294901760
        %1181 = vmatprep.subr.mxu0 %v1180
        %v1182 = vand.u32 %v698, 4294901760
        %1183 = vmatpush1.msra.mxu0 %v1182
        %v1184 = vand.u32 %v697, 4294901760
        %1185 = vmatprep.subr.mxu0 %v1184
        %v1186 = vand.u32 %v696, 4294901760
        %1187 = vmatpush1.msra.mxu0 %v1186
        %v1188 = vand.u32 %v695, 4294901760
        %1189 = vmatprep.subr.mxu0 %v1188
        %v1190 = vand.u32 %v694, 4294901760
        %1191 = vmatpush1.msra.mxu0 %v1190
        %v1192 = vand.u32 %v693, 4294901760
        %1193 = vmatprep.subr.mxu0 %v1192
        %v1194 = vand.u32 %v692, 4294901760
        %1195 = vmatpush1.msra.mxu0 %v1194
        %1196 = vmatprep.subr.mxu0 0.0
        %1197 = vmatpush2.msra.mxu0 0.0
        %1198 = vmatprep.subr.mxu0 0.0
        %1199 = vmatpush2.msra.mxu0 0.0
        %1200 = vmatprep.subr.mxu0 0.0
        %1201 = vmatpush2.msra.mxu0 0.0
        %1202 = vmatprep.subr.mxu0 0.0
        %1203 = vmatpush2.msra.mxu0 0.0
        %1204 = vmatprep.subr.mxu0 0.0
        %1205 = vmatpush2.msra.mxu0 0.0
        %1206 = vmatprep.subr.mxu0 0.0
        %1207 = vmatpush2.msra.mxu0 0.0
        %1208 = vmatprep.subr.mxu0 0.0
        %1209 = vmatpush2.msra.mxu0 0.0
        %1210 = vmatprep.subr.mxu0 0.0
        %1211 = vmatpush2.msra.mxu0 0.0
        %1212 = vmatprep.subr.mxu0 0.0
        %1213 = vmatpush2.msra.mxu0 0.0
        %1214 = vmatprep.subr.mxu0 0.0
        %1215 = vmatpush2.msra.mxu0 0.0
        %1216 = vmatprep.subr.mxu0 0.0
        %1217 = vmatpush2.msra.mxu0 0.0
        %1218 = vmatprep.subr.mxu0 0.0
        %1219 = vmatpush2.msra.mxu0 0.0
        %1220 = vmatprep.subr.mxu0 0.0
        %1221 = vmatpush2.msra.mxu0 0.0
        %1222 = vmatprep.subr.mxu0 0.0
        %1223 = vmatpush2.msra.mxu0 0.0
        %1224 = vmatprep.subr.mxu0 0.0
        %1225 = vmatpush2.msra.mxu0 0.0
        %1226 = vmatprep.subr.mxu0 0.0
        %1227 = vmatpush2.msra.mxu0 0.0
        %1228 = vmatprep.mubr.f32.mxu0 0.0
        %v1229 = vand.u32 %v710, 4294901760
        %v1230 = vsub.f32 %v710, %v1229
        %v1231 = vand.u32 %v1230, 4294901760
        %1232 = vmatmul.mubr.f32.gmra.mxu0 %v1231
        %v1233 = vpop.f32.mrf.mxu0
        %v1234 = vadd.f32 %v1120, %v1233
        %v1235 = vpop.f32.mrf.mxu0
        %v1236 = vadd.f32 %v1122, %v1235
        %1237 = vmatprep.mubr.f32.mxu0 0.0
        %v1238 = vand.u32 %v713, 4294901760
        %v1239 = vsub.f32 %v713, %v1238
        %v1240 = vand.u32 %v1239, 4294901760
        %1241 = vmatmul.mubr.f32.gmra.mxu0 %v1240
        %v1242 = vpop.f32.mrf.mxu0
        %v1243 = vadd.f32 %v1128, %v1242
        %v1244 = vpop.f32.mrf.mxu0
        %v1245 = vadd.f32 %v1130, %v1244
        %1246 = vmatprep.mubr.f32.mxu0 0.0
        %v1247 = vand.u32 %v716, 4294901760
        %v1248 = vsub.f32 %v716, %v1247
        %v1249 = vand.u32 %v1248, 4294901760
        %1250 = vmatmul.mubr.f32.gmra.mxu0 %v1249
        %v1251 = vpop.f32.mrf.mxu0
        %v1252 = vadd.f32 %v1136, %v1251
        %v1253 = vpop.f32.mrf.mxu0
        %v1254 = vadd.f32 %v1138, %v1253
        %1255 = vmatprep.mubr.f32.mxu0 0.0
        %v1256 = vand.u32 %v719, 4294901760
        %v1257 = vsub.f32 %v719, %v1256
        %v1258 = vand.u32 %v1257, 4294901760
        %1259 = vmatmul.mubr.f32.gmra.mxu0 %v1258
        %v1260 = vpop.f32.mrf.mxu0
        %v1261 = vadd.f32 %v1144, %v1260
        %v1262 = vpop.f32.mrf.mxu0
        %v1263 = vadd.f32 %v1146, %v1262
        %1264 = vdwg.mxu0
        %1265 = vmatprep.subr.mxu0 0.0
        %1266 = vmatpush1.msra.mxu0 0.0
        %1267 = vmatprep.subr.mxu0 0.0
        %1268 = vmatpush1.msra.mxu0 0.0
        %1269 = vmatprep.subr.mxu0 0.0
        %1270 = vmatpush1.msra.mxu0 0.0
        %1271 = vmatprep.subr.mxu0 0.0
        %1272 = vmatpush1.msra.mxu0 0.0
        %1273 = vmatprep.subr.mxu0 0.0
        %1274 = vmatpush1.msra.mxu0 0.0
        %1275 = vmatprep.subr.mxu0 0.0
        %1276 = vmatpush1.msra.mxu0 0.0
        %1277 = vmatprep.subr.mxu0 0.0
        %1278 = vmatpush1.msra.mxu0 0.0
        %1279 = vmatprep.subr.mxu0 0.0
        %1280 = vmatpush1.msra.mxu0 0.0
        %v1281 = vand.u32 %v707, 4294901760
        %v1282 = vsub.f32 %v707, %v1281
        %v1283 = vand.u32 %v1282, 4294901760
        %1284 = vmatprep.subr.mxu0 %v1283
        %v1285 = vand.u32 %v706, 4294901760
        %v1286 = vsub.f32 %v706, %v1285
        %v1287 = vand.u32 %v1286, 4294901760
        %1288 = vmatpush1.msra.mxu0 %v1287
        %v1289 = vand.u32 %v705, 4294901760
        %v1290 = vsub.f32 %v705, %v1289
        %v1291 = vand.u32 %v1290, 4294901760
        %1292 = vmatprep.subr.mxu0 %v1291
        %v1293 = vand.u32 %v704, 4294901760
        %v1294 = vsub.f32 %v704, %v1293
        %v1295 = vand.u32 %v1294, 4294901760
        %1296 = vmatpush1.msra.mxu0 %v1295
        %v1297 = vand.u32 %v703, 4294901760
        %v1298 = vsub.f32 %v703, %v1297
        %v1299 = vand.u32 %v1298, 4294901760
        %1300 = vmatprep.subr.mxu0 %v1299
        %v1301 = vand.u32 %v702, 4294901760
        %v1302 = vsub.f32 %v702, %v1301
        %v1303 = vand.u32 %v1302, 4294901760
        %1304 = vmatpush1.msra.mxu0 %v1303
        %v1305 = vand.u32 %v701, 4294901760
        %v1306 = vsub.f32 %v701, %v1305
        %v1307 = vand.u32 %v1306, 4294901760
        %1308 = vmatprep.subr.mxu0 %v1307
        %v1309 = vand.u32 %v700, 4294901760
        %v1310 = vsub.f32 %v700, %v1309
        %v1311 = vand.u32 %v1310, 4294901760
        %1312 = vmatpush1.msra.mxu0 %v1311
        %v1313 = vand.u32 %v699, 4294901760
        %v1314 = vsub.f32 %v699, %v1313
        %v1315 = vand.u32 %v1314, 4294901760
        %1316 = vmatprep.subr.mxu0 %v1315
        %v1317 = vand.u32 %v698, 4294901760
        %v1318 = vsub.f32 %v698, %v1317
        %v1319 = vand.u32 %v1318, 4294901760
        %1320 = vmatpush1.msra.mxu0 %v1319
        %v1321 = vand.u32 %v697, 4294901760
        %v1322 = vsub.f32 %v697, %v1321
        %v1323 = vand.u32 %v1322, 4294901760
        %1324 = vmatprep.subr.mxu0 %v1323
        %v1325 = vand.u32 %v696, 4294901760
        %v1326 = vsub.f32 %v696, %v1325
        %v1327 = vand.u32 %v1326, 4294901760
        %1328 = vmatpush1.msra.mxu0 %v1327
        %v1329 = vand.u32 %v695, 4294901760
        %v1330 = vsub.f32 %v695, %v1329
        %v1331 = vand.u32 %v1330, 4294901760
        %1332 = vmatprep.subr.mxu0 %v1331
        %v1333 = vand.u32 %v694, 4294901760
        %v1334 = vsub.f32 %v694, %v1333
        %v1335 = vand.u32 %v1334, 4294901760
        %1336 = vmatpush1.msra.mxu0 %v1335
        %v1337 = vand.u32 %v693, 4294901760
        %v1338 = vsub.f32 %v693, %v1337
        %v1339 = vand.u32 %v1338, 4294901760
        %1340 = vmatprep.subr.mxu0 %v1339
        %v1341 = vand.u32 %v692, 4294901760
        %v1342 = vsub.f32 %v692, %v1341
        %v1343 = vand.u32 %v1342, 4294901760
        %1344 = vmatpush1.msra.mxu0 %v1343
        %1345 = vmatprep.subr.mxu0 0.0
        %1346 = vmatpush2.msra.mxu0 0.0
        %1347 = vmatprep.subr.mxu0 0.0
        %1348 = vmatpush2.msra.mxu0 0.0
        %1349 = vmatprep.subr.mxu0 0.0
        %1350 = vmatpush2.msra.mxu0 0.0
        %1351 = vmatprep.subr.mxu0 0.0
        %1352 = vmatpush2.msra.mxu0 0.0
        %1353 = vmatprep.subr.mxu0 0.0
        %1354 = vmatpush2.msra.mxu0 0.0
        %1355 = vmatprep.subr.mxu0 0.0
        %1356 = vmatpush2.msra.mxu0 0.0
        %1357 = vmatprep.subr.mxu0 0.0
        %1358 = vmatpush2.msra.mxu0 0.0
        %1359 = vmatprep.subr.mxu0 0.0
        %1360 = vmatpush2.msra.mxu0 0.0
        %1361 = vmatprep.subr.mxu0 0.0
        %1362 = vmatpush2.msra.mxu0 0.0
        %1363 = vmatprep.subr.mxu0 0.0
        %1364 = vmatpush2.msra.mxu0 0.0
        %1365 = vmatprep.subr.mxu0 0.0
        %1366 = vmatpush2.msra.mxu0 0.0
        %1367 = vmatprep.subr.mxu0 0.0
        %1368 = vmatpush2.msra.mxu0 0.0
        %1369 = vmatprep.subr.mxu0 0.0
        %1370 = vmatpush2.msra.mxu0 0.0
        %1371 = vmatprep.subr.mxu0 0.0
        %1372 = vmatpush2.msra.mxu0 0.0
        %1373 = vmatprep.subr.mxu0 0.0
        %1374 = vmatpush2.msra.mxu0 0.0
        %1375 = vmatprep.subr.mxu0 0.0
        %1376 = vmatpush2.msra.mxu0 0.0
        %1377 = vmatprep.mubr.f32.mxu0 0.0
        %v1378 = vand.u32 %v710, 4294901760
        %1379 = vmatmul.mubr.f32.gmra.mxu0 %v1378
        %v1380 = vpop.f32.mrf.mxu0
        %v1381 = vadd.f32 %v1234, %v1380
        %v1382 = vpop.f32.mrf.mxu0
        %v1383 = vadd.f32 %v1236, %v1382
        %1384 = vmatprep.mubr.f32.mxu0 0.0
        %v1385 = vand.u32 %v713, 4294901760
        %1386 = vmatmul.mubr.f32.gmra.mxu0 %v1385
        %v1387 = vpop.f32.mrf.mxu0
        %v1388 = vadd.f32 %v1243, %v1387
        %v1389 = vpop.f32.mrf.mxu0
        %v1390 = vadd.f32 %v1245, %v1389
        %1391 = vmatprep.mubr.f32.mxu0 0.0
        %v1392 = vand.u32 %v716, 4294901760
        %1393 = vmatmul.mubr.f32.gmra.mxu0 %v1392
        %v1394 = vpop.f32.mrf.mxu0
        %v1395 = vadd.f32 %v1252, %v1394
        %v1396 = vpop.f32.mrf.mxu0
        %v1397 = vadd.f32 %v1254, %v1396
        %1398 = vmatprep.mubr.f32.mxu0 0.0
        %v1399 = vand.u32 %v719, 4294901760
        %1400 = vmatmul.mubr.f32.gmra.mxu0 %v1399
        %v1401 = vpop.f32.mrf.mxu0
        %v1402 = vadd.f32 %v1261, %v1401
        %v1403 = vpop.f32.mrf.mxu0
        %v1404 = vadd.f32 %v1263, %v1403
        %1405 = vdwg.mxu0
        %1406 = vmatprep.subr.mxu0 0.0
        %1407 = vmatpush1.msra.mxu0 0.0
        %1408 = vmatprep.subr.mxu0 0.0
        %1409 = vmatpush1.msra.mxu0 0.0
        %1410 = vmatprep.subr.mxu0 0.0
        %1411 = vmatpush1.msra.mxu0 0.0
        %1412 = vmatprep.subr.mxu0 0.0
        %1413 = vmatpush1.msra.mxu0 0.0
        %1414 = vmatprep.subr.mxu0 0.0
        %1415 = vmatpush1.msra.mxu0 0.0
        %1416 = vmatprep.subr.mxu0 0.0
        %1417 = vmatpush1.msra.mxu0 0.0
        %1418 = vmatprep.subr.mxu0 0.0
        %1419 = vmatpush1.msra.mxu0 0.0
        %1420 = vmatprep.subr.mxu0 0.0
        %1421 = vmatpush1.msra.mxu0 0.0
        %v1422 = vand.u32 %v707, 4294901760
        %1423 = vmatprep.subr.mxu0 %v1422
        %v1424 = vand.u32 %v706, 4294901760
        %1425 = vmatpush1.msra.mxu0 %v1424
        %v1426 = vand.u32 %v705, 4294901760
        %1427 = vmatprep.subr.mxu0 %v1426
        %v1428 = vand.u32 %v704, 4294901760
        %1429 = vmatpush1.msra.mxu0 %v1428
        %v1430 = vand.u32 %v703, 4294901760
        %1431 = vmatprep.subr.mxu0 %v1430
        %v1432 = vand.u32 %v702, 4294901760
        %1433 = vmatpush1.msra.mxu0 %v1432
        %v1434 = vand.u32 %v701, 4294901760
        %1435 = vmatprep.subr.mxu0 %v1434
        %v1436 = vand.u32 %v700, 4294901760
        %1437 = vmatpush1.msra.mxu0 %v1436
        %v1438 = vand.u32 %v699, 4294901760
        %1439 = vmatprep.subr.mxu0 %v1438
        %v1440 = vand.u32 %v698, 4294901760
        %1441 = vmatpush1.msra.mxu0 %v1440
        %v1442 = vand.u32 %v697, 4294901760
        %1443 = vmatprep.subr.mxu0 %v1442
        %v1444 = vand.u32 %v696, 4294901760
        %1445 = vmatpush1.msra.mxu0 %v1444
        %v1446 = vand.u32 %v695, 4294901760
        %1447 = vmatprep.subr.mxu0 %v1446
        %v1448 = vand.u32 %v694, 4294901760
        %1449 = vmatpush1.msra.mxu0 %v1448
        %v1450 = vand.u32 %v693, 4294901760
        %1451 = vmatprep.subr.mxu0 %v1450
        %v1452 = vand.u32 %v692, 4294901760
        %1453 = vmatpush1.msra.mxu0 %v1452
        %1454 = vmatprep.subr.mxu0 0.0
        %1455 = vmatpush2.msra.mxu0 0.0
        %1456 = vmatprep.subr.mxu0 0.0
        %1457 = vmatpush2.msra.mxu0 0.0
        %1458 = vmatprep.subr.mxu0 0.0
        %1459 = vmatpush2.msra.mxu0 0.0
        %1460 = vmatprep.subr.mxu0 0.0
        %1461 = vmatpush2.msra.mxu0 0.0
        %1462 = vmatprep.subr.mxu0 0.0
        %1463 = vmatpush2.msra.mxu0 0.0
        %1464 = vmatprep.subr.mxu0 0.0
        %1465 = vmatpush2.msra.mxu0 0.0
        %1466 = vmatprep.subr.mxu0 0.0
        %1467 = vmatpush2.msra.mxu0 0.0
        %1468 = vmatprep.subr.mxu0 0.0
        %1469 = vmatpush2.msra.mxu0 0.0
        %1470 = vmatprep.subr.mxu0 0.0
        %1471 = vmatpush2.msra.mxu0 0.0
        %1472 = vmatprep.subr.mxu0 0.0
        %1473 = vmatpush2.msra.mxu0 0.0
        %1474 = vmatprep.subr.mxu0 0.0
        %1475 = vmatpush2.msra.mxu0 0.0
        %1476 = vmatprep.subr.mxu0 0.0
        %1477 = vmatpush2.msra.mxu0 0.0
        %1478 = vmatprep.subr.mxu0 0.0
        %1479 = vmatpush2.msra.mxu0 0.0
        %1480 = vmatprep.subr.mxu0 0.0
        %1481 = vmatpush2.msra.mxu0 0.0
        %1482 = vmatprep.subr.mxu0 0.0
        %1483 = vmatpush2.msra.mxu0 0.0
        %1484 = vmatprep.subr.mxu0 0.0
        %1485 = vmatpush2.msra.mxu0 0.0
        %1486 = vmatprep.mubr.f32.mxu0 0.0
        %v1487 = vand.u32 %v710, 4294901760
        %1488 = vmatmul.mubr.f32.gmra.mxu0 %v1487
        %v1489 = vpop.f32.mrf.mxu0
        %v1490 = vadd.f32 %v1381, %v1489
        %v1491 = vpop.f32.mrf.mxu0
        %v1492 = vadd.f32 %v1383, %v1491
        %1493 = vmatprep.mubr.f32.mxu0 0.0
        %v1494 = vand.u32 %v713, 4294901760
        %1495 = vmatmul.mubr.f32.gmra.mxu0 %v1494
        %v1496 = vpop.f32.mrf.mxu0
        %v1497 = vadd.f32 %v1388, %v1496
        %v1498 = vpop.f32.mrf.mxu0
        %v1499 = vadd.f32 %v1390, %v1498
        %1500 = vmatprep.mubr.f32.mxu0 0.0
        %v1501 = vand.u32 %v716, 4294901760
        %1502 = vmatmul.mubr.f32.gmra.mxu0 %v1501
        %v1503 = vpop.f32.mrf.mxu0
        %v1504 = vadd.f32 %v1395, %v1503
        %v1505 = vpop.f32.mrf.mxu0
        %v1506 = vadd.f32 %v1397, %v1505
        %1507 = vmatprep.mubr.f32.mxu0 0.0
        %v1508 = vand.u32 %v719, 4294901760
        %1509 = vmatmul.mubr.f32.gmra.mxu0 %v1508
        %v1510 = vpop.f32.mrf.mxu0
        %v1511 = vadd.f32 %v1402, %v1510
        %v1512 = vpop.f32.mrf.mxu0
        %v1513 = vadd.f32 %v1404, %v1512
        %1514 = vdwg.mxu0
        %v1515 = vmul.f32 %v1490, %v433
        %v1516 = vmul.f32 %v1492, %v433
        %v1517 = vmul.f32 %v1497, %v434
        %v1518 = vmul.f32 %v1499, %v434
        %v1519 = vmul.f32 %v403, %v1515
        %v1520 = vmul.f32 %v404, %v1516
        %v1521 = vmul.f32 %v405, %v1517
        %v1522 = vmul.f32 %v406, %v1518
        %v1523 = vmul.f32 %v413, %v1515
        %v1524 = vmul.f32 %v413, %v1516
        %v1525 = vmul.f32 %v414, %v1517
        %v1526 = vmul.f32 %v414, %v1518
        %v1527 = vsub.f32 %v1504, %v1523
        %v1528 = vsub.f32 %v1506, %v1524
        %v1529 = vsub.f32 %v1511, %v1525
        %v1530 = vsub.f32 %v1513, %v1526
        %v1531 = vadd.f32 %v1519, %v1527
        %v1532 = vadd.f32 %v1520, %v1528
        %v1533 = vadd.f32 %v1521, %v1529
        %v1534 = vadd.f32 %v1522, %v1530
        %1535 = vst [vmem:[%s380] sm:$0xff] %v1531
        %1536 = vst [vmem:[%s380 + $0x8] sm:$0xff] %v1532
        %1537 = vst [vmem:[%s380 + $0x10] sm:$0xff] %v1533
        %1538 = vst [vmem:[%s380 + $0x18] sm:$0xff] %v1534
        %s1539 = sand.u32 %s216, 1
        %s1540 = scalar_lea.sflag [#allocation4], %s1539
        %s1541 = sand.u32 %s216, 1
        %s1542 = smul.addr %s1541, 32
        %s1543 = scalar_lea.vmem [#allocation7], %s1542
        // Predicated region
        $region57: #{tpu_custom_call.1} parent=47 // pred_check
          %p1544 = pneg %p226
        $region58: #{tpu_custom_call.1} parent=47 // pred_check_branch
          %1546 = sbr.rel (%p1544) target = $region60
        $region59: #{tpu_custom_call.1} parent=47 // pred_region
          %s1547 = smul.u32 2, %s30
          %s1549 = ssub.s32 512, 512
          %1550 = vsyncadd %s1540, %s1549
          %s1551 = smul.addr %s1547, 2
          %s1552 = smul.addr %s29, 4
          %s1553 = sadd.s32 %s1551, %s1552
          %s1554 = smul.addr %s1553, 128
          %s1555 = scalar_lea.hbm %s7, %s1554
          %s1556 = sshll.u32 %s1543, 4
          %s1557 = int_to_ptr.vmem [resolvable:$true] %s1556
          %1562 = dma.vmem_to_hbm [thread:$0]  %s1557, 512, %s1555, %s1540, 256, 256, 16
        $region60: #{tpu_custom_call.1} parent=47 // pred_fallthru
          _
      $region48: #{tpu_custom_call.1} parent=5 // pred_fallthru
        _
      %p1563 = scmp.le.s32.totalorder 2, %s20
      // Predicated region
      $region61: #{tpu_custom_call.1} parent=5 // pred_check
        %p1564 = pneg %p1563
      $region62: #{tpu_custom_call.1} parent=5 // pred_check_branch
        %1566 = sbr.rel (%p1564) target = $region64
      $region63: #{tpu_custom_call.1} parent=5 // pred_region
        %s1567 = ssub.s32 %s20, 2
        // Predicated region
        $region65: #{tpu_custom_call.1} parent=63 // pred_check
          %p1568 = pneg %p232
        $region66: #{tpu_custom_call.1} parent=63 // pred_check_branch
          %1570 = sbr.rel (%p1568) target = $region68
        $region67: #{tpu_custom_call.1} parent=63 // pred_region
          %s1571 = sand.u32 %s217, 1
          %s1572 = scalar_lea.sflag [#allocation4], %s1571
          %s1573 = sand.u32 %s217, 1
          %s1574 = smul.addr %s1573, 32
          %s1575 = scalar_lea.vmem [#allocation7], %s1574
          %1576 = dma.done %s1572, 512
        $region68: #{tpu_custom_call.1} parent=63 // pred_fallthru
          _
      $region64: #{tpu_custom_call.1} parent=5 // pred_fallthru
        _
    $region6: #{tpu_custom_call.1} parent=1 // loop_footer
      %s24 = sadd.s32 1, %s20
    $region7: #{tpu_custom_call.1} parent=1 // loop_footer_branch
      %19 = sbr.rel target = $region3
    $region8: #{tpu_custom_call.1} parent=1 // loop_exit
      _
    %1577 = vsyncpa [#allocation3], 1
    %s1578 = scalar_lea.sflag [#allocation3], 1
    %1579 = vsyncpa %s1578, 1
    %1580 = vsyncpa [#allocation6], 1
    %1581 = vsyncpa [#allocation4], 1
    %s1582 = scalar_lea.sflag [#allocation4], 1
    %1583 = vsyncpa %s1582, 1

</llo_original>
